<compile_context>
chip_gen: v6e
topology: v6e:2x2x1
jax: 0.10.0
libtpu: 0.0.40
codegen_flags: <defaults>
</compile_context>

<pallas_src>
import numpy as np
import jax
import jax.numpy as jnp
from jax.experimental import pallas as pl
from jax.experimental.pallas import tpu as pltpu


# ----------------------------------------------------------------------------
# Kernels
# ----------------------------------------------------------------------------
def _clla_block_kernel(x1g_ref, x2_ref, wq_ref, bq_ref, wkv_ref, bkv_ref,
                       wdet1_ref, wdet2_ref, bdet_ref, out_ref):
    """Fused CLLABlock tile.

    x1g_ref : (4, TILE, C1)  2x2 neighborhood of the fine feature map
    x2_ref  : (TILE, C2)     coarse feature map rows
    Host-folded weights:
      wq    = (wc2 @ wq) / range          bq    = (bc2 @ wq + bq) / range
      wkv   = [wc1 @ wk | wc1 @ wv]       bkv   = [bc1@wk + bk | bc1@wv + bv]
      wdet1 = 0.5 * wdet                  wdet2 = 0.5 * (wc2 @ wdet)
      bdet  = 0.5 * (bc2 @ wdet) + bdet
    Output is written transposed, (Cout, TILE), so stores are lane-dense.
    """
    four, tile, c1 = x1g_ref.shape
    cm = wq_ref.shape[1]

    # Q projection (conv2 and the 1/range scale are folded into wq/bq).
    x2 = x2_ref[...]
    q = jnp.dot(x2, wq_ref[...], preferred_element_type=jnp.float32) + bq_ref[...]

    # K/V projections: stack the 4 neighborhoods along M and use one fused
    # (C1, 2*Cm) weight -> a single large MXU pass instead of 8 tiny ones.
    x1 = x1g_ref[...].reshape(four * tile, c1)
    kv = jnp.dot(x1, wkv_ref[...], preferred_element_type=jnp.float32) + bkv_ref[...]
    k = kv[:, :cm].reshape(four, tile, cm)                           # (4, TILE, Cm)
    v = kv[:, cm:].reshape(four, tile, cm)                           # (4, TILE, Cm)

    # "inverse relevance" softmax over the 4 neighborhoods (f32 VPU/EUP math).
    dots = jnp.sum(q[None, :, :] * k, axis=-1, keepdims=True)        # (4, TILE, 1)
    irr = 2.0 * jnp.mean(dots, axis=0, keepdims=True) - dots
    m = jnp.max(irr, axis=0, keepdims=True)
    e = jnp.exp(irr - m)
    att = e * pl.reciprocal(jnp.sum(e, axis=0, keepdims=True), approx=True)
    attn_out = jnp.sum(att * v, axis=0)                              # (TILE, Cm) f32

    # det conv with the (attn_out + conv2(x2)) / 2 blend folded into weights.
    w1 = wdet1_ref[...]
    out = (jnp.dot(attn_out.astype(w1.dtype), w1, preferred_element_type=jnp.float32)
           + jnp.dot(x2, wdet2_ref[...], preferred_element_type=jnp.float32)
           + bdet_ref[...])                                          # (TILE, Cout)
    out_ref[...] = out.T.astype(out_ref.dtype)                       # (Cout, TILE)


def _pointwise_head_kernel(x_ref, w_ref, b_ref, o_ref):
    o = jnp.dot(x_ref[...], w_ref[...], preferred_element_type=jnp.float32) + b_ref[...]
    o_ref[...] = o.T.astype(o_ref.dtype)                             # (Cout, TILE)


# ----------------------------------------------------------------------------
# Wrappers
# ----------------------------------------------------------------------------
def _round_up(n, m):
    return ((n + m - 1) // m) * m


def _choose_tile(n, cap=1024, min_steps=4):
    # Lane-aligned (multiple of 128) row tile.  Prefer >= min_steps grid steps
    # (keeps both TensorCores busy on v7x), never below 128 rows, cap for VMEM.
    t = _round_up(max(1, (n + min_steps - 1) // min_steps), 128)
    return max(128, min(cap, t))


def _fold_clla_params(p, dtype):
    """Fold the 1x1 convs and the 1/range scale into the projections (host side)."""
    inv_range = 0.5
    wq = (p["wc2"] @ p["wq"]) * inv_range
    bq = (p["bc2"] @ p["wq"] + p["bq"]) * inv_range
    wk = p["wc1"] @ p["wk"]
    bk = p["bc1"] @ p["wk"] + p["bk"]
    wv = p["wc1"] @ p["wv"]
    bv = p["bc1"] @ p["wv"] + p["bv"]
    wkv = jnp.concatenate([wk, wv], axis=1)            # (C1, 2*Cm)
    bkv = jnp.concatenate([bk, bv], axis=1)            # (1, 2*Cm)
    wdet1 = 0.5 * p["wdet"]                            # (Cm, Cout)
    wdet2 = 0.5 * (p["wc2"] @ p["wdet"])               # (C2, Cout)
    bdet = 0.5 * (p["bc2"] @ p["wdet"]) + p["bdet"]    # (1, Cout)
    return tuple(a.astype(dtype) for a in (wq, bq, wkv, bkv, wdet1, wdet2, bdet))


def clla_block(x1_nchw, x2_nchw, params, compute_dtype=jnp.float32, tile_cap=1024):
    """CLLABlock forward.  Returns (B, H2, W2, Cout), f32."""
    B, C1, H1, W1 = x1_nchw.shape
    _, C2, H2, W2 = x2_nchw.shape
    assert H1 == 2 * H2 and W1 == 2 * W2, "range=2 attention expects 2x resolution"
    N = B * H2 * W2

    wq, bq, wkv, bkv, wdet1, wdet2, bdet = _fold_clla_params(params, compute_dtype)
    Cm = wq.shape[1]
    Cout = wdet1.shape[1]

    # One fused transpose+gather for x1 (single HBM pass): (4, N, C1), ij = i*2+j.
    x1g = x1_nchw.astype(compute_dtype).reshape(B, C1, H2, 2, W2, 2)
    x1g = jnp.transpose(x1g, (3, 5, 0, 2, 4, 1)).reshape(4, N, C1)
    x2f = jnp.transpose(x2_nchw.astype(compute_dtype), (0, 2, 3, 1)).reshape(N, C2)

    TILE = _choose_tile(N, cap=tile_cap)
    N_pad = _round_up(N, TILE)
    if N_pad != N:                                     # robust to any N (cdiv + pad)
        x1g = jnp.pad(x1g, ((0, 0), (0, N_pad - N), (0, 0)))
        x2f = jnp.pad(x2f, ((0, N_pad - N), (0, 0)))

    full = lambda i: (0, 0)
    out_t = pl.pallas_call(
        _clla_block_kernel,
        out_shape=jax.ShapeDtypeStruct((Cout, N_pad), jnp.float32),
        grid=(N_pad // TILE,),
        in_specs=[
            pl.BlockSpec((4, TILE, C1), lambda i: (0, i, 0)),
            pl.BlockSpec((TILE, C2), lambda i: (i, 0)),
            pl.BlockSpec((C2, Cm), full), pl.BlockSpec((1, Cm), full),
            pl.BlockSpec((C1, 2 * Cm), full), pl.BlockSpec((1, 2 * Cm), full),
            pl.BlockSpec((Cm, Cout), full),
            pl.BlockSpec((C2, Cout), full),
            pl.BlockSpec((1, Cout), full),
        ],
        out_specs=pl.BlockSpec((Cout, TILE), lambda i: (0, i)),
        compiler_params=pltpu.CompilerParams(dimension_semantics=("parallel",)),
    )(x1g, x2f, wq, bq, wkv, bkv, wdet1, wdet2, bdet)
    return out_t[:, :N].T.reshape(B, H2, W2, Cout)


def pointwise_conv(x_nchw, w, b, compute_dtype=jnp.float32, tile_cap=2048):
    """1x1 conv head.  Returns (B, H, W, Cout), f32.
    (These heads are tiny; kept as a single simple Pallas call per level.)"""
    B, Cin, H, W = x_nchw.shape
    Cout = w.shape[1]
    N = B * H * W
    xf = jnp.transpose(x_nchw.astype(compute_dtype), (0, 2, 3, 1)).reshape(N, Cin)
    TILE = _choose_tile(N, cap=tile_cap)
    N_pad = _round_up(N, TILE)
    if N_pad != N:
        xf = jnp.pad(xf, ((0, N_pad - N), (0, 0)))
    out_t = pl.pallas_call(
        _pointwise_head_kernel,
        out_shape=jax.ShapeDtypeStruct((Cout, N_pad), jnp.float32),
        grid=(N_pad // TILE,),
        in_specs=[
            pl.BlockSpec((TILE, Cin), lambda i: (i, 0)),
            pl.BlockSpec((Cin, Cout), lambda i: (0, 0)),
            pl.BlockSpec((1, Cout), lambda i: (0, 0)),
        ],
        out_specs=pl.BlockSpec((Cout, TILE), lambda i: (0, i)),
        compiler_params=pltpu.CompilerParams(dimension_semantics=("parallel",)),
    )(xf, w.astype(compute_dtype), b.astype(compute_dtype))
    return out_t[:, :N].T.reshape(B, H, W, Cout)


def clla_detect_forward(xs, params, na, no, compute_dtype=jnp.float32):
    """Training-mode CLLADetect forward: list p with p[i] of shape
    (B, na, ny, nx, no), matching the PyTorch permute."""
    nl = len(params["heads"]) + 1
    p = []
    for i in range(nl):
        if i == 0:
            nhwc = clla_block(xs[0], xs[1], params["det"], compute_dtype)
        else:
            w, b = params["heads"][i - 1]
            nhwc = pointwise_conv(xs[i + 1], w, b, compute_dtype)
        B, ny, nx, _ = nhwc.shape
        pi = nhwc.reshape(B, ny, nx, na, no)
        pi = jnp.transpose(pi, (0, 3, 1, 2, 4))                      # (B,na,ny,nx,no)
        p.append(pi)
    return p


# ----------------------------------------------------------------------------
# Pure-JAX reference (mirrors the PyTorch math, f32, unfolded) for verification
# ----------------------------------------------------------------------------
def _ref_clla_block(x1_nchw, x2_nchw, pr):
    x1 = jnp.transpose(x1_nchw, (0, 2, 3, 1)) @ pr["wc1"] + pr["bc1"][0]
    x2 = jnp.transpose(x2_nchw, (0, 2, 3, 1)) @ pr["wc2"] + pr["bc2"][0]
    B, H1, W1, Cm = x1.shape
    H2, W2 = x2.shape[1:3]
    loc = x1.reshape(B, H2, 2, W2, 2, Cm).transpose(0, 1, 3, 2, 4, 5).reshape(B, H2, W2, 4, Cm)
    q = x2 @ pr["wq"] + pr["bq"][0]
    k = loc @ pr["wk"] + pr["bk"][0]
    v = loc @ pr["wv"] + pr["bv"][0]
    dots = jnp.sum(q[:, :, :, None, :] * k, axis=-1) / 2.0
    irr = jnp.mean(dots, axis=-1, keepdims=True) * 2.0 - dots
    att = jax.nn.softmax(irr, axis=-1)
    f = jnp.sum(v * att[..., None], axis=3)
    f = (f + x2) / 2.0
    return f @ pr["wdet"] + pr["bdet"][0]


def _ref_forward(xs, params, na, no):
    nl = len(params["heads"]) + 1
    p = []
    for i in range(nl):
        if i == 0:
            nhwc = _ref_clla_block(xs[0], xs[1], params["det"])
        else:
            w, b = params["heads"][i - 1]
            nhwc = jnp.transpose(xs[i + 1], (0, 2, 3, 1)) @ w + b[0]
        B, ny, nx, _ = nhwc.shape
        p.append(jnp.transpose(nhwc.reshape(B, ny, nx, na, no), (0, 3, 1, 2, 4)))
    return p


# ----------------------------------------------------------------------------
if __name__ == "__main__":
    # Small config: nc=3 -> no=8, na=2, nl=3, ch=(ch0, ch1, ch2, ch3)
    nc, na, nl = 3, 2, 3
    no = nc + 5
    cout = no * na                      # 16
    ch = (32, 48, 40, 24)
    cm = ch[0]                          # CLLABlock internal width (c_)
    B, H2, W2 = 2, 8, 8

    key = jax.random.PRNGKey(0)
    ks = iter(jax.random.split(key, 32))

    def mk(shape, fan_in):
        return (jax.random.normal(next(ks), shape, dtype=jnp.float32)
                / np.sqrt(float(fan_in)))

    det_params = {
        "wc1": mk((ch[0], cm), ch[0]), "bc1": mk((1, cm), cm),
        "wc2": mk((ch[1], cm), ch[1]), "bc2": mk((1, cm), cm),
        "wq": mk((cm, cm), cm), "bq": mk((1, cm), cm),
        "wk": mk((cm, cm), cm), "bk": mk((1, cm), cm),
        "wv": mk((cm, cm), cm), "bv": mk((1, cm), cm),
        "wdet": mk((cm, cout), cm), "bdet": mk((1, cout), cm),
    }
    head_params = [(mk((ch[i], cout), ch[i]), mk((1, cout), ch[i]))
                   for i in range(2, 2 + nl - 1)]
    params = {"det": det_params, "heads": head_params}

    # Inputs (PyTorch NCHW convention); x[0] is 2x the resolution of x[1].
    kx = jax.random.split(jax.random.PRNGKey(1), 4)
    xs = [
        jax.random.normal(kx[0], (B, ch[0], 2 * H2, 2 * W2), dtype=jnp.float32),
        jax.random.normal(kx[1], (B, ch[1], H2, W2), dtype=jnp.float32),
        jax.random.normal(kx[2], (B, ch[2], 8, 8), dtype=jnp.float32),
        jax.random.normal(kx[3], (B, ch[3], 4, 4), dtype=jnp.float32),
    ]

    p_ref = _ref_forward(xs, params, na, no)

    # f32 path: strict structural check (tolerance accommodates the host-side
    # weight folding and the approximate EUP reciprocal in the softmax).
    p32 = clla_detect_forward(xs, params, na, no, compute_dtype=jnp.float32)
    p32 = [jax.block_until_ready(t) for t in p32]
    for a, b in zip(p32, p_ref):
        np.testing.assert_allclose(np.asarray(a), np.asarray(b), rtol=1e-2, atol=1e-2)

    # bf16 operand path (halves HBM traffic, bf16 MXU on v6e/v7x); compared
    # against the exact f32 reference at a bf16-appropriate tolerance.
    pbf = clla_detect_forward(xs, params, na, no, compute_dtype=jnp.bfloat16)
    pbf = [jax.block_until_ready(t) for t in pbf]
    for a, b in zip(pbf, p_ref):
        np.testing.assert_allclose(np.asarray(a), np.asarray(b), rtol=1e-1, atol=1.5e-1)

    assert p32[0].shape == (B, na, H2, W2, no)
    assert p32[1].shape == (B, na, 8, 8, no)
    assert p32[2].shape == (B, na, 4, 4, no)
    print("KERNEL_OK")
</pallas_src>

<mosaic_0001>
module attributes {stable_mosaic.version = 11 : i64} {
  func.func @_clla_block_kernel(%arg0: i32, %arg1: memref<4x128x32xf32, #tpu.memory_space<vmem>>, %arg2: memref<128x48xf32, #tpu.memory_space<vmem>>, %arg3: memref<48x32xf32, #tpu.memory_space<vmem>>, %arg4: memref<1x32xf32, #tpu.memory_space<vmem>>, %arg5: memref<32x64xf32, #tpu.memory_space<vmem>>, %arg6: memref<1x64xf32, #tpu.memory_space<vmem>>, %arg7: memref<32x16xf32, #tpu.memory_space<vmem>>, %arg8: memref<48x16xf32, #tpu.memory_space<vmem>>, %arg9: memref<1x16xf32, #tpu.memory_space<vmem>>, %arg10: memref<16x128xf32, #tpu.memory_space<vmem>>) attributes {dimension_semantics = [#tpu.dimension_semantics<parallel>], iteration_bounds = array<i64: 1>, scalar_prefetch = 0 : i64, scratch_operands = 0 : i64, tpu.core_type = #tpu.core_type<tc>, window_params = [{transform_indices = @transform_0, window_bounds = array<i64: 4, 128, 32>}, {transform_indices = @transform_1, window_bounds = array<i64: 128, 48>}, {pipeline_mode = #tpu.pipeline_mode<synchronous>, transform_indices = @transform_2, window_bounds = array<i64: 48, 32>}, {pipeline_mode = #tpu.pipeline_mode<synchronous>, transform_indices = @transform_3, window_bounds = array<i64: 1, 32>}, {pipeline_mode = #tpu.pipeline_mode<synchronous>, transform_indices = @transform_4, window_bounds = array<i64: 32, 64>}, {pipeline_mode = #tpu.pipeline_mode<synchronous>, transform_indices = @transform_5, window_bounds = array<i64: 1, 64>}, {pipeline_mode = #tpu.pipeline_mode<synchronous>, transform_indices = @transform_6, window_bounds = array<i64: 32, 16>}, {pipeline_mode = #tpu.pipeline_mode<synchronous>, transform_indices = @transform_7, window_bounds = array<i64: 48, 16>}, {pipeline_mode = #tpu.pipeline_mode<synchronous>, transform_indices = @transform_8, window_bounds = array<i64: 1, 16>}, {transform_indices = @transform_9, window_bounds = array<i64: 16, 128>}]} {
    %c0 = arith.constant 0 : index
    %c0_0 = arith.constant 0 : index
    %0 = vector.load %arg2[%c0, %c0_0] : memref<128x48xf32, #tpu.memory_space<vmem>>, vector<128x48xf32>
    %c0_1 = arith.constant 0 : index
    %c0_2 = arith.constant 0 : index
    %1 = vector.load %arg3[%c0_1, %c0_2] : memref<48x32xf32, #tpu.memory_space<vmem>>, vector<48x32xf32>
    %cst = arith.constant dense<0.000000e+00> : vector<128x32xf32>
    %2 = tpu.matmul %0, %1, %cst {dimension_numbers = #tpu.dot_dimension_numbers<[1], [0], [0], [1], [0, 0, 1, 1], [], []>} : vector<128x48xf32>, vector<48x32xf32>, vector<128x32xf32> -> vector<128x32xf32>
    %c0_3 = arith.constant 0 : index
    %c0_4 = arith.constant 0 : index
    %3 = vector.load %arg4[%c0_3, %c0_4] : memref<1x32xf32, #tpu.memory_space<vmem>>, vector<1x32xf32>
    %4 = vector.broadcast %3 : vector<1x32xf32> to vector<128x32xf32>
    %5 = arith.addf %2, %4 : vector<128x32xf32>
    %c0_5 = arith.constant 0 : index
    %c0_6 = arith.constant 0 : index
    %c0_7 = arith.constant 0 : index
    %6 = vector.load %arg1[%c0_5, %c0_6, %c0_7] : memref<4x128x32xf32, #tpu.memory_space<vmem>>, vector<4x128x32xf32>
    %7 = vector.shape_cast %6 : vector<4x128x32xf32> to vector<512x32xf32>
    %c0_8 = arith.constant 0 : index
    %c0_9 = arith.constant 0 : index
    %8 = vector.load %arg5[%c0_8, %c0_9] : memref<32x64xf32, #tpu.memory_space<vmem>>, vector<32x64xf32>
    %cst_10 = arith.constant dense<0.000000e+00> : vector<512x64xf32>
    %9 = tpu.matmul %7, %8, %cst_10 {dimension_numbers = #tpu.dot_dimension_numbers<[1], [0], [0], [1], [0, 0, 1, 1], [], []>} : vector<512x32xf32>, vector<32x64xf32>, vector<512x64xf32> -> vector<512x64xf32>
    %c0_11 = arith.constant 0 : index
    %c0_12 = arith.constant 0 : index
    %10 = vector.load %arg6[%c0_11, %c0_12] : memref<1x64xf32, #tpu.memory_space<vmem>>, vector<1x64xf32>
    %11 = vector.broadcast %10 : vector<1x64xf32> to vector<512x64xf32>
    %12 = arith.addf %9, %11 : vector<512x64xf32>
    %13 = vector.extract_strided_slice %12 {offsets = [0, 0], sizes = [512, 32], strides = [1, 1]} : vector<512x64xf32> to vector<512x32xf32>
    %14 = vector.shape_cast %13 : vector<512x32xf32> to vector<4x128x32xf32>
    %15 = vector.extract_strided_slice %12 {offsets = [0, 32], sizes = [512, 32], strides = [1, 1]} : vector<512x64xf32> to vector<512x32xf32>
    %16 = vector.shape_cast %15 : vector<512x32xf32> to vector<4x128x32xf32>
    %17 = vector.shape_cast %5 : vector<128x32xf32> to vector<1x128x32xf32>
    %18 = vector.broadcast %17 : vector<1x128x32xf32> to vector<4x128x32xf32>
    %19 = arith.mulf %18, %14 : vector<4x128x32xf32>
    %cst_13 = arith.constant dense<0.000000e+00> : vector<4x128xf32>
    %20 = vector.multi_reduction <add>, %19, %cst_13 [2] : vector<4x128x32xf32> to vector<4x128xf32>
    %21 = vector.shape_cast %20 : vector<4x128xf32> to vector<4x128x1xf32>
    %cst_14 = arith.constant dense<0.000000e+00> : vector<128x1xf32>
    %22 = vector.multi_reduction <add>, %21, %cst_14 [0] : vector<4x128x1xf32> to vector<128x1xf32>
    %23 = vector.shape_cast %22 : vector<128x1xf32> to vector<1x128x1xf32>
    %cst_15 = arith.constant 4.000000e+00 : f32
    %24 = vector.broadcast %cst_15 : f32 to vector<1x128x1xf32>
    %25 = arith.divf %23, %24 : vector<1x128x1xf32>
    %cst_16 = arith.constant 2.000000e+00 : f32
    %26 = vector.broadcast %cst_16 : f32 to vector<1x128x1xf32>
    %27 = arith.mulf %26, %25 : vector<1x128x1xf32>
    %28 = vector.broadcast %27 : vector<1x128x1xf32> to vector<4x128x1xf32>
    %29 = arith.subf %28, %21 : vector<4x128x1xf32>
    %cst_17 = arith.constant dense<0xFF800000> : vector<128x1xf32>
    %30 = vector.multi_reduction <maximumf>, %29, %cst_17 [0] : vector<4x128x1xf32> to vector<128x1xf32>
    %31 = vector.shape_cast %30 : vector<128x1xf32> to vector<1x128x1xf32>
    %32 = vector.broadcast %31 : vector<1x128x1xf32> to vector<4x128x1xf32>
    %33 = arith.subf %29, %32 : vector<4x128x1xf32>
    %34 = math.exp %33 : vector<4x128x1xf32>
    %cst_18 = arith.constant dense<0.000000e+00> : vector<128x1xf32>
    %35 = vector.multi_reduction <add>, %34, %cst_18 [0] : vector<4x128x1xf32> to vector<128x1xf32>
    %36 = vector.shape_cast %35 : vector<128x1xf32> to vector<1x128x1xf32>
    %37 = tpu.reciprocal %36 {approx = true} : vector<1x128x1xf32> -> vector<1x128x1xf32>
    %38 = vector.broadcast %37 : vector<1x128x1xf32> to vector<4x128x1xf32>
    %39 = arith.mulf %34, %38 : vector<4x128x1xf32>
    %40 = vector.broadcast %39 : vector<4x128x1xf32> to vector<4x128x32xf32>
    %41 = arith.mulf %40, %16 : vector<4x128x32xf32>
    %cst_19 = arith.constant dense<0.000000e+00> : vector<128x32xf32>
    %42 = vector.multi_reduction <add>, %41, %cst_19 [0] : vector<4x128x32xf32> to vector<128x32xf32>
    %c0_20 = arith.constant 0 : index
    %c0_21 = arith.constant 0 : index
    %43 = vector.load %arg7[%c0_20, %c0_21] : memref<32x16xf32, #tpu.memory_space<vmem>>, vector<32x16xf32>
    %cst_22 = arith.constant dense<0.000000e+00> : vector<128x16xf32>
    %44 = tpu.matmul %42, %43, %cst_22 {dimension_numbers = #tpu.dot_dimension_numbers<[1], [0], [0], [1], [0, 0, 1, 1], [], []>} : vector<128x32xf32>, vector<32x16xf32>, vector<128x16xf32> -> vector<128x16xf32>
    %c0_23 = arith.constant 0 : index
    %c0_24 = arith.constant 0 : index
    %45 = vector.load %arg8[%c0_23, %c0_24] : memref<48x16xf32, #tpu.memory_space<vmem>>, vector<48x16xf32>
    %cst_25 = arith.constant dense<0.000000e+00> : vector<128x16xf32>
    %46 = tpu.matmul %0, %45, %cst_25 {dimension_numbers = #tpu.dot_dimension_numbers<[1], [0], [0], [1], [0, 0, 1, 1], [], []>} : vector<128x48xf32>, vector<48x16xf32>, vector<128x16xf32> -> vector<128x16xf32>
    %47 = arith.addf %44, %46 : vector<128x16xf32>
    %c0_26 = arith.constant 0 : index
    %c0_27 = arith.constant 0 : index
    %48 = vector.load %arg9[%c0_26, %c0_27] : memref<1x16xf32, #tpu.memory_space<vmem>>, vector<1x16xf32>
    %49 = vector.broadcast %48 : vector<1x16xf32> to vector<128x16xf32>
    %50 = arith.addf %47, %49 : vector<128x16xf32>
    %51 = tpu.transpose %50, [1, 0] : vector<128x16xf32> -> vector<16x128xf32>
    %c0_28 = arith.constant 0 : index
    %c0_29 = arith.constant 0 : index
    %52 = vector.load %arg10[%c0_28, %c0_29] : memref<16x128xf32, #tpu.memory_space<vmem>>, vector<16x128xf32>
    tpu.vector_store %arg10[%c0_28, %c0_29], %51 {strides = array<i32>} : memref<16x128xf32, #tpu.memory_space<vmem>>, vector<16x128xf32>,
    return
  }
  func.func @transform_0(%arg0: i32) -> (i32, i32, i32) {
    %c0_i32 = arith.constant 0 : i32
    %c0_i32_0 = arith.constant 0 : i32
    %c0_i32_1 = arith.constant 0 : i32
    return %c0_i32, %arg0, %c0_i32_0 : i32, i32, i32
  }
  func.func @transform_1(%arg0: i32) -> (i32, i32) {
    %c0_i32 = arith.constant 0 : i32
    %c0_i32_0 = arith.constant 0 : i32
    return %arg0, %c0_i32 : i32, i32
  }
  func.func @transform_2(%arg0: i32) -> (i32, i32) {
    %c0_i32 = arith.constant 0 : i32
    %c0_i32_0 = arith.constant 0 : i32
    %c0_i32_1 = arith.constant 0 : i32
    return %c0_i32, %c0_i32_0 : i32, i32
  }
  func.func @transform_3(%arg0: i32) -> (i32, i32) {
    %c0_i32 = arith.constant 0 : i32
    %c0_i32_0 = arith.constant 0 : i32
    %c0_i32_1 = arith.constant 0 : i32
    return %c0_i32, %c0_i32_0 : i32, i32
  }
  func.func @transform_4(%arg0: i32) -> (i32, i32) {
    %c0_i32 = arith.constant 0 : i32
    %c0_i32_0 = arith.constant 0 : i32
    %c0_i32_1 = arith.constant 0 : i32
    return %c0_i32, %c0_i32_0 : i32, i32
  }
  func.func @transform_5(%arg0: i32) -> (i32, i32) {
    %c0_i32 = arith.constant 0 : i32
    %c0_i32_0 = arith.constant 0 : i32
    %c0_i32_1 = arith.constant 0 : i32
    return %c0_i32, %c0_i32_0 : i32, i32
  }
  func.func @transform_6(%arg0: i32) -> (i32, i32) {
    %c0_i32 = arith.constant 0 : i32
    %c0_i32_0 = arith.constant 0 : i32
    %c0_i32_1 = arith.constant 0 : i32
    return %c0_i32, %c0_i32_0 : i32, i32
  }
  func.func @transform_7(%arg0: i32) -> (i32, i32) {
    %c0_i32 = arith.constant 0 : i32
    %c0_i32_0 = arith.constant 0 : i32
    %c0_i32_1 = arith.constant 0 : i32
    return %c0_i32, %c0_i32_0 : i32, i32
  }
  func.func @transform_8(%arg0: i32) -> (i32, i32) {
    %c0_i32 = arith.constant 0 : i32
    %c0_i32_0 = arith.constant 0 : i32
    %c0_i32_1 = arith.constant 0 : i32
    return %c0_i32, %c0_i32_0 : i32, i32
  }
  func.func @transform_9(%arg0: i32) -> (i32, i32) {
    %c0_i32 = arith.constant 0 : i32
    %c0_i32_0 = arith.constant 0 : i32
    return %c0_i32, %arg0 : i32, i32
  }
}

</mosaic_0001>

<llo_original>
// kernel: tpu_custom_call.1
$region0: #{tpu_custom_call.1}
  #allocation0 [shape = 'u32[]', space=smem, size = 0x4, offset = 0x4, fixed_abs, tag = 'smem constant byte address 0x4 - core index']
  #allocation1 [shape = 'u32[144,128]{1,0:T(1,128)}', space=vmem, size = 0x12000, scoped, tag = 'internal scratch']
  %s0 = inlined_call_operand.vmem [shape: f32[4,128,32], index: 0, kind: input, shape index: {}]
  %s1 = inlined_call_operand.vmem [shape: f32[128,48], index: 1, kind: input, shape index: {}]
  %s2 = inlined_call_operand.vmem [shape: f32[48,32], index: 2, kind: input, shape index: {}]
  %s3 = inlined_call_operand.vmem [shape: f32[1,32], index: 3, kind: input, shape index: {}]
  %s4 = inlined_call_operand.vmem [shape: f32[32,64], index: 4, kind: input, shape index: {}]
  %s5 = inlined_call_operand.vmem [shape: f32[1,64], index: 5, kind: input, shape index: {}]
  %s6 = inlined_call_operand.vmem [shape: f32[32,16], index: 6, kind: input, shape index: {}]
  %s7 = inlined_call_operand.vmem [shape: f32[48,16], index: 7, kind: input, shape index: {}]
  %s8 = inlined_call_operand.vmem [shape: f32[1,16], index: 8, kind: input, shape index: {}]
  %s9 = inlined_call_operand.hbm [shape: f32[16,128], index: 9, kind: output, shape index: {}]
  %s10 = sld [smem:[#allocation0]]
  $region46: #{tpu_custom_call.1} parent=0
    _
  %s12 = ssub.s32 1, %s10
  %s13 = scalar_select 0, %s12, %s10
  $region1: #{tpu_custom_call.1} parent=0
    #allocation2 [shape = 'u8[8192]{0}', space=vmem, size = 0x2000, scoped, tag = 'output window, operand 0, single buffered']
    #allocation3 [shape = 's32[1]{0}', space=sflag, size = 0x4, scoped, tag = 'scoped memory for tpu_custom_call.1']
    %14 = vsyncpa [#allocation3], 0
    // Predicated region
    $region2: #{tpu_custom_call.1} parent=1 // pred_check
      _
    $region3: #{tpu_custom_call.1} parent=1 // pred_check_branch
      %16 = sbr.rel (0) target = $region5
    $region4: #{tpu_custom_call.1} parent=1 // pred_region
      _
    $region5: #{tpu_custom_call.1} parent=1 // pred_fallthru
      _
    // Predicated region
    $region6: #{tpu_custom_call.1} parent=1 // pred_check
      _
    $region7: #{tpu_custom_call.1} parent=1 // pred_check_branch
      %18 = sbr.rel (0) target = $region9
    $region8: #{tpu_custom_call.1} parent=1 // pred_region
      _
    $region9: #{tpu_custom_call.1} parent=1 // pred_fallthru
      _
    // Predicated region
    $region10: #{tpu_custom_call.1} parent=1 // pred_check
      _
    $region11: #{tpu_custom_call.1} parent=1 // pred_check_branch
      %20 = sbr.rel (0) target = $region13
    $region12: #{tpu_custom_call.1} parent=1 // pred_region
      _
    $region13: #{tpu_custom_call.1} parent=1 // pred_fallthru
      _
    // Predicated region
    $region14: #{tpu_custom_call.1} parent=1 // pred_check
      _
    $region15: #{tpu_custom_call.1} parent=1 // pred_check_branch
      %22 = sbr.rel (0) target = $region17
    $region16: #{tpu_custom_call.1} parent=1 // pred_region
      _
    $region17: #{tpu_custom_call.1} parent=1 // pred_fallthru
      _
    // Predicated region
    $region18: #{tpu_custom_call.1} parent=1 // pred_check
      _
    $region19: #{tpu_custom_call.1} parent=1 // pred_check_branch
      %24 = sbr.rel (0) target = $region21
    $region20: #{tpu_custom_call.1} parent=1 // pred_region
      _
    $region21: #{tpu_custom_call.1} parent=1 // pred_fallthru
      _
    // Predicated region
    $region22: #{tpu_custom_call.1} parent=1 // pred_check
      _
    $region23: #{tpu_custom_call.1} parent=1 // pred_check_branch
      %26 = sbr.rel (0) target = $region25
    $region24: #{tpu_custom_call.1} parent=1 // pred_region
      _
    $region25: #{tpu_custom_call.1} parent=1 // pred_fallthru
      _
    // Predicated region
    $region26: #{tpu_custom_call.1} parent=1 // pred_check
      _
    $region27: #{tpu_custom_call.1} parent=1 // pred_check_branch
      %28 = sbr.rel (0) target = $region29
    $region28: #{tpu_custom_call.1} parent=1 // pred_region
      _
    $region29: #{tpu_custom_call.1} parent=1 // pred_fallthru
      _
    // Predicated region
    $region30: #{tpu_custom_call.1} parent=1 // pred_check
      _
    $region31: #{tpu_custom_call.1} parent=1 // pred_check_branch
      %30 = sbr.rel (0) target = $region33
    $region32: #{tpu_custom_call.1} parent=1 // pred_region
      _
    $region33: #{tpu_custom_call.1} parent=1 // pred_fallthru
      _
    // Predicated region
    $region34: #{tpu_custom_call.1} parent=1 // pred_check
      _
    $region35: #{tpu_custom_call.1} parent=1 // pred_check_branch
      %32 = sbr.rel (0) target = $region37
    $region36: #{tpu_custom_call.1} parent=1 // pred_region
      _
    $region37: #{tpu_custom_call.1} parent=1 // pred_fallthru
      _
    %v33 = vld [vmem:[%s1] sm:$0xff]
    %v34 = vld [vmem:[%s1 + $0x8] sm:$0xff]
    %v35 = vld [vmem:[%s1 + $0x10] sm:$0xff]
    %v36 = vld [vmem:[%s1 + $0x18] sm:$0xff]
    %v37 = vld [vmem:[%s1 + $0x20] sm:$0xff]
    %v38 = vld [vmem:[%s1 + $0x28] sm:$0xff]
    %v39 = vld [vmem:[%s1 + $0x30] sm:$0xff]
    %v40 = vld [vmem:[%s1 + $0x38] sm:$0xff]
    %v41 = vld [vmem:[%s1 + $0x40] sm:$0xff]
    %v42 = vld [vmem:[%s1 + $0x48] sm:$0xff]
    %v43 = vld [vmem:[%s1 + $0x50] sm:$0xff]
    %v44 = vld [vmem:[%s1 + $0x58] sm:$0xff]
    %v45 = vld [vmem:[%s1 + $0x60] sm:$0xff]
    %v46 = vld [vmem:[%s1 + $0x68] sm:$0xff]
    %v47 = vld [vmem:[%s1 + $0x70] sm:$0xff]
    %v48 = vld [vmem:[%s1 + $0x78] sm:$0xff]
    %v49 = vld [vmem:[%s2] sm:$0xff]
    %v50 = vld [vmem:[%s2 + $0x8] sm:$0xff]
    %v51 = vld [vmem:[%s2 + $0x10] sm:$0xff]
    %v52 = vld [vmem:[%s2 + $0x18] sm:$0xff]
    %v53 = vld [vmem:[%s2 + $0x20] sm:$0xff]
    %v54 = vld [vmem:[%s2 + $0x28] sm:$0xff]
    %v55 = vld [vmem:[%s3] sm:$0x1]
    %v57 = vlaneseq
    %v58 = vshrl.u32 %v57, 7
    %v59 = vsub.s32 0, %v58
    %v60 = vrot.slane %v55, %v59
    %vm62 = vcmask 392192
    %v64 = vsel %vm62, %v33, 0
    %v67 = vsel %vm62, %v34, 0
    %v70 = vsel %vm62, %v35, 0
    %v73 = vsel %vm62, %v36, 0
    %v76 = vsel %vm62, %v37, 0
    %v79 = vsel %vm62, %v38, 0
    %v82 = vsel %vm62, %v39, 0
    %v85 = vsel %vm62, %v40, 0
    %v88 = vsel %vm62, %v41, 0
    %v91 = vsel %vm62, %v42, 0
    %v94 = vsel %vm62, %v43, 0
    %v97 = vsel %vm62, %v44, 0
    %v100 = vsel %vm62, %v45, 0
    %v103 = vsel %vm62, %v46, 0
    %v106 = vsel %vm62, %v47, 0
    %v109 = vsel %vm62, %v48, 0
    %111 = vmatprep.subr.mxu0 0.0
    %112 = vmatpush1.msra.mxu0 0.0
    %113 = vmatprep.subr.mxu0 0.0
    %114 = vmatpush1.msra.mxu0 0.0
    %115 = vmatprep.subr.mxu0 0.0
    %116 = vmatpush1.msra.mxu0 0.0
    %117 = vmatprep.subr.mxu0 0.0
    %118 = vmatpush1.msra.mxu0 0.0
    %119 = vmatprep.subr.mxu0 0.0
    %120 = vmatpush1.msra.mxu0 0.0
    %121 = vmatprep.subr.mxu0 0.0
    %122 = vmatpush1.msra.mxu0 0.0
    %123 = vmatprep.subr.mxu0 0.0
    %124 = vmatpush1.msra.mxu0 0.0
    %125 = vmatprep.subr.mxu0 0.0
    %126 = vmatpush1.msra.mxu0 0.0
    %127 = vmatprep.subr.mxu0 0.0
    %128 = vmatpush1.msra.mxu0 0.0
    %129 = vmatprep.subr.mxu0 0.0
    %130 = vmatpush1.msra.mxu0 0.0
    %131 = vmatprep.subr.mxu0 0.0
    %132 = vmatpush1.msra.mxu0 %v54
    %133 = vmatprep.subr.mxu0 0.0
    %134 = vmatpush1.msra.mxu0 %v53
    %135 = vmatprep.subr.mxu0 0.0
    %136 = vmatpush1.msra.mxu0 %v52
    %137 = vmatprep.subr.mxu0 0.0
    %138 = vmatpush1.msra.mxu0 %v51
    %139 = vmatprep.subr.mxu0 0.0
    %140 = vmatpush1.msra.mxu0 %v50
    %141 = vmatprep.subr.mxu0 0.0
    %142 = vmatpush1.msra.mxu0 %v49
    %143 = vmatprep.subr.mxu0 0.0
    %144 = vmatpush2.msra.mxu0 0.0
    %145 = vmatprep.subr.mxu0 0.0
    %146 = vmatpush2.msra.mxu0 0.0
    %147 = vmatprep.subr.mxu0 0.0
    %148 = vmatpush2.msra.mxu0 0.0
    %149 = vmatprep.subr.mxu0 0.0
    %150 = vmatpush2.msra.mxu0 0.0
    %151 = vmatprep.subr.mxu0 0.0
    %152 = vmatpush2.msra.mxu0 0.0
    %153 = vmatprep.subr.mxu0 0.0
    %154 = vmatpush2.msra.mxu0 0.0
    %155 = vmatprep.subr.mxu0 0.0
    %156 = vmatpush2.msra.mxu0 0.0
    %157 = vmatprep.subr.mxu0 0.0
    %158 = vmatpush2.msra.mxu0 0.0
    %159 = vmatprep.subr.mxu0 0.0
    %160 = vmatpush2.msra.mxu0 0.0
    %161 = vmatprep.subr.mxu0 0.0
    %162 = vmatpush2.msra.mxu0 0.0
    %163 = vmatprep.subr.mxu0 0.0
    %164 = vmatpush2.msra.mxu0 0.0
    %165 = vmatprep.subr.mxu0 0.0
    %166 = vmatpush2.msra.mxu0 0.0
    %167 = vmatprep.subr.mxu0 0.0
    %168 = vmatpush2.msra.mxu0 0.0
    %169 = vmatprep.subr.mxu0 0.0
    %170 = vmatpush2.msra.mxu0 0.0
    %171 = vmatprep.subr.mxu0 0.0
    %172 = vmatpush2.msra.mxu0 0.0
    %173 = vmatprep.subr.mxu0 0.0
    %174 = vmatpush2.msra.mxu0 0.0
    %175 = vmatprep.mubr.f32.mxu0 0.0
    %176 = vmatmul.mubr.f32.gmra.mxu0 %v64
    %v177 = vpop.f32.mrf.mxu0
    %v178 = vadd.f32 %v60, %v177
    %v179 = vpop.f32.mrf.mxu0
    %180 = vmatprep.mubr.f32.mxu0 0.0
    %181 = vmatmul.mubr.f32.gmra.mxu0 %v67
    %v182 = vpop.f32.mrf.mxu0
    %v183 = vadd.f32 %v60, %v182
    %v184 = vpop.f32.mrf.mxu0
    %185 = vmatprep.mubr.f32.mxu0 0.0
    %186 = vmatmul.mubr.f32.gmra.mxu0 %v70
    %v187 = vpop.f32.mrf.mxu0
    %v188 = vadd.f32 %v60, %v187
    %v189 = vpop.f32.mrf.mxu0
    %190 = vmatprep.mubr.f32.mxu0 0.0
    %191 = vmatmul.mubr.f32.gmra.mxu0 %v73
    %v192 = vpop.f32.mrf.mxu0
    %v193 = vadd.f32 %v60, %v192
    %v194 = vpop.f32.mrf.mxu0
    %195 = vmatprep.mubr.f32.mxu0 0.0
    %196 = vmatmul.mubr.f32.gmra.mxu0 %v76
    %v197 = vpop.f32.mrf.mxu0
    %v198 = vadd.f32 %v60, %v197
    %v199 = vpop.f32.mrf.mxu0
    %200 = vmatprep.mubr.f32.mxu0 0.0
    %201 = vmatmul.mubr.f32.gmra.mxu0 %v79
    %v202 = vpop.f32.mrf.mxu0
    %v203 = vadd.f32 %v60, %v202
    %v204 = vpop.f32.mrf.mxu0
    %205 = vmatprep.mubr.f32.mxu0 0.0
    %206 = vmatmul.mubr.f32.gmra.mxu0 %v82
    %v207 = vpop.f32.mrf.mxu0
    %v208 = vadd.f32 %v60, %v207
    %v209 = vpop.f32.mrf.mxu0
    %210 = vmatprep.mubr.f32.mxu0 0.0
    %211 = vmatmul.mubr.f32.gmra.mxu0 %v85
    %v212 = vpop.f32.mrf.mxu0
    %v213 = vadd.f32 %v60, %v212
    %v214 = vpop.f32.mrf.mxu0
    %215 = vmatprep.mubr.f32.mxu0 0.0
    %216 = vmatmul.mubr.f32.gmra.mxu0 %v88
    %v217 = vpop.f32.mrf.mxu0
    %v218 = vadd.f32 %v60, %v217
    %v219 = vpop.f32.mrf.mxu0
    %220 = vmatprep.mubr.f32.mxu0 0.0
    %221 = vmatmul.mubr.f32.gmra.mxu0 %v91
    %v222 = vpop.f32.mrf.mxu0
    %v223 = vadd.f32 %v60, %v222
    %v224 = vpop.f32.mrf.mxu0
    %225 = vmatprep.mubr.f32.mxu0 0.0
    %226 = vmatmul.mubr.f32.gmra.mxu0 %v94
    %v227 = vpop.f32.mrf.mxu0
    %v228 = vadd.f32 %v60, %v227
    %v229 = vpop.f32.mrf.mxu0
    %230 = vmatprep.mubr.f32.mxu0 0.0
    %231 = vmatmul.mubr.f32.gmra.mxu0 %v97
    %v232 = vpop.f32.mrf.mxu0
    %v233 = vadd.f32 %v60, %v232
    %v234 = vpop.f32.mrf.mxu0
    %235 = vmatprep.mubr.f32.mxu0 0.0
    %236 = vmatmul.mubr.f32.gmra.mxu0 %v100
    %v237 = vpop.f32.mrf.mxu0
    %v238 = vadd.f32 %v60, %v237
    %v239 = vpop.f32.mrf.mxu0
    %240 = vmatprep.mubr.f32.mxu0 0.0
    %241 = vmatmul.mubr.f32.gmra.mxu0 %v103
    %v242 = vpop.f32.mrf.mxu0
    %v243 = vadd.f32 %v60, %v242
    %v244 = vpop.f32.mrf.mxu0
    %245 = vmatprep.mubr.f32.mxu0 0.0
    %246 = vmatmul.mubr.f32.gmra.mxu0 %v106
    %v247 = vpop.f32.mrf.mxu0
    %v248 = vadd.f32 %v60, %v247
    %v249 = vpop.f32.mrf.mxu0
    %250 = vmatprep.mubr.f32.mxu0 0.0
    %251 = vmatmul.mubr.f32.gmra.mxu0 %v109
    %v252 = vpop.f32.mrf.mxu0
    %v253 = vadd.f32 %v60, %v252
    %v254 = vpop.f32.mrf.mxu0
    %255 = vdwg.mxu0
    %v256 = vld [vmem:[%s0] sm:$0xff]
    %v257 = vld [vmem:[%s0 + $0x8] sm:$0xff]
    %v258 = vld [vmem:[%s0 + $0x10] sm:$0xff]
    %v259 = vld [vmem:[%s0 + $0x18] sm:$0xff]
    %v260 = vld [vmem:[%s0 + $0x20] sm:$0xff]
    %v261 = vld [vmem:[%s0 + $0x28] sm:$0xff]
    %v262 = vld [vmem:[%s0 + $0x30] sm:$0xff]
    %v263 = vld [vmem:[%s0 + $0x38] sm:$0xff]
    %v264 = vld [vmem:[%s0 + $0x40] sm:$0xff]
    %v265 = vld [vmem:[%s0 + $0x48] sm:$0xff]
    %v266 = vld [vmem:[%s0 + $0x50] sm:$0xff]
    %v267 = vld [vmem:[%s0 + $0x58] sm:$0xff]
    %v268 = vld [vmem:[%s0 + $0x60] sm:$0xff]
    %v269 = vld [vmem:[%s0 + $0x68] sm:$0xff]
    %v270 = vld [vmem:[%s0 + $0x70] sm:$0xff]
    %v271 = vld [vmem:[%s0 + $0x78] sm:$0xff]
    %v272 = vld [vmem:[%s0 + $0x80] sm:$0xff]
    %v273 = vld [vmem:[%s0 + $0x88] sm:$0xff]
    %v274 = vld [vmem:[%s0 + $0x90] sm:$0xff]
    %v275 = vld [vmem:[%s0 + $0x98] sm:$0xff]
    %v276 = vld [vmem:[%s0 + $0xa0] sm:$0xff]
    %v277 = vld [vmem:[%s0 + $0xa8] sm:$0xff]
    %v278 = vld [vmem:[%s0 + $0xb0] sm:$0xff]
    %v279 = vld [vmem:[%s0 + $0xb8] sm:$0xff]
    %v280 = vld [vmem:[%s0 + $0xc0] sm:$0xff]
    %v281 = vld [vmem:[%s0 + $0xc8] sm:$0xff]
    %v282 = vld [vmem:[%s0 + $0xd0] sm:$0xff]
    %v283 = vld [vmem:[%s0 + $0xd8] sm:$0xff]
    %v284 = vld [vmem:[%s0 + $0xe0] sm:$0xff]
    %v285 = vld [vmem:[%s0 + $0xe8] sm:$0xff]
    %v286 = vld [vmem:[%s0 + $0xf0] sm:$0xff]
    %v287 = vld [vmem:[%s0 + $0xf8] sm:$0xff]
    %v288 = vld [vmem:[%s0 + $0x100] sm:$0xff]
    %v289 = vld [vmem:[%s0 + $0x108] sm:$0xff]
    %v290 = vld [vmem:[%s0 + $0x110] sm:$0xff]
    %v291 = vld [vmem:[%s0 + $0x118] sm:$0xff]
    %v292 = vld [vmem:[%s0 + $0x120] sm:$0xff]
    %v293 = vld [vmem:[%s0 + $0x128] sm:$0xff]
    %v294 = vld [vmem:[%s0 + $0x130] sm:$0xff]
    %v295 = vld [vmem:[%s0 + $0x138] sm:$0xff]
    %v296 = vld [vmem:[%s0 + $0x140] sm:$0xff]
    %v297 = vld [vmem:[%s0 + $0x148] sm:$0xff]
    %v298 = vld [vmem:[%s0 + $0x150] sm:$0xff]
    %v299 = vld [vmem:[%s0 + $0x158] sm:$0xff]
    %v300 = vld [vmem:[%s0 + $0x160] sm:$0xff]
    %v301 = vld [vmem:[%s0 + $0x168] sm:$0xff]
    %v302 = vld [vmem:[%s0 + $0x170] sm:$0xff]
    %v303 = vld [vmem:[%s0 + $0x178] sm:$0xff]
    %v304 = vld [vmem:[%s0 + $0x180] sm:$0xff]
    %v305 = vld [vmem:[%s0 + $0x188] sm:$0xff]
    %v306 = vld [vmem:[%s0 + $0x190] sm:$0xff]
    %v307 = vld [vmem:[%s0 + $0x198] sm:$0xff]
    %v308 = vld [vmem:[%s0 + $0x1a0] sm:$0xff]
    %v309 = vld [vmem:[%s0 + $0x1a8] sm:$0xff]
    %v310 = vld [vmem:[%s0 + $0x1b0] sm:$0xff]
    %v311 = vld [vmem:[%s0 + $0x1b8] sm:$0xff]
    %v312 = vld [vmem:[%s0 + $0x1c0] sm:$0xff]
    %v313 = vld [vmem:[%s0 + $0x1c8] sm:$0xff]
    %v314 = vld [vmem:[%s0 + $0x1d0] sm:$0xff]
    %v315 = vld [vmem:[%s0 + $0x1d8] sm:$0xff]
    %v316 = vld [vmem:[%s0 + $0x1e0] sm:$0xff]
    %v317 = vld [vmem:[%s0 + $0x1e8] sm:$0xff]
    %v318 = vld [vmem:[%s0 + $0x1f0] sm:$0xff]
    %v319 = vld [vmem:[%s0 + $0x1f8] sm:$0xff]
    %v320 = vld [vmem:[%s4] sm:$0xff]
    %v321 = vld [vmem:[%s4 + $0x8] sm:$0xff]
    %v322 = vld [vmem:[%s4 + $0x10] sm:$0xff]
    %v323 = vld [vmem:[%s4 + $0x18] sm:$0xff]
    %v324 = vld [vmem:[%s5] sm:$0x1]
    %v326 = vlaneseq
    %v327 = vshrl.u32 %v326, 7
    %v328 = vsub.s32 0, %v327
    %v329 = vrot.slane %v324, %v328
    %vm331 = vcmask 261120
    %v333 = vsel %vm331, %v256, 0
    %v336 = vsel %vm331, %v257, 0
    %v339 = vsel %vm331, %v258, 0
    %v342 = vsel %vm331, %v259, 0
    %v345 = vsel %vm331, %v260, 0
    %v348 = vsel %vm331, %v261, 0
    %v351 = vsel %vm331, %v262, 0
    %v354 = vsel %vm331, %v263, 0
    %v357 = vsel %vm331, %v264, 0
    %v360 = vsel %vm331, %v265, 0
    %v363 = vsel %vm331, %v266, 0
    %v366 = vsel %vm331, %v267, 0
    %v369 = vsel %vm331, %v268, 0
    %v372 = vsel %vm331, %v269, 0
    %v375 = vsel %vm331, %v270, 0
    %v378 = vsel %vm331, %v271, 0
    %v381 = vsel %vm331, %v272, 0
    %v384 = vsel %vm331, %v273, 0
    %v387 = vsel %vm331, %v274, 0
    %v390 = vsel %vm331, %v275, 0
    %v393 = vsel %vm331, %v276, 0
    %v396 = vsel %vm331, %v277, 0
    %v399 = vsel %vm331, %v278, 0
    %v402 = vsel %vm331, %v279, 0
    %v405 = vsel %vm331, %v280, 0
    %v408 = vsel %vm331, %v281, 0
    %v411 = vsel %vm331, %v282, 0
    %v414 = vsel %vm331, %v283, 0
    %v417 = vsel %vm331, %v284, 0
    %v420 = vsel %vm331, %v285, 0
    %v423 = vsel %vm331, %v286, 0
    %v426 = vsel %vm331, %v287, 0
    %v429 = vsel %vm331, %v288, 0
    %v432 = vsel %vm331, %v289, 0
    %v435 = vsel %vm331, %v290, 0
    %v438 = vsel %vm331, %v291, 0
    %v441 = vsel %vm331, %v292, 0
    %v444 = vsel %vm331, %v293, 0
    %v447 = vsel %vm331, %v294, 0
    %v450 = vsel %vm331, %v295, 0
    %v453 = vsel %vm331, %v296, 0
    %v456 = vsel %vm331, %v297, 0
    %v459 = vsel %vm331, %v298, 0
    %v462 = vsel %vm331, %v299, 0
    %v465 = vsel %vm331, %v300, 0
    %v468 = vsel %vm331, %v301, 0
    %v471 = vsel %vm331, %v302, 0
    %v474 = vsel %vm331, %v303, 0
    %v477 = vsel %vm331, %v304, 0
    %v480 = vsel %vm331, %v305, 0
    %v483 = vsel %vm331, %v306, 0
    %v486 = vsel %vm331, %v307, 0
    %v489 = vsel %vm331, %v308, 0
    %v492 = vsel %vm331, %v309, 0
    %v495 = vsel %vm331, %v310, 0
    %v498 = vsel %vm331, %v311, 0
    %v501 = vsel %vm331, %v312, 0
    %v504 = vsel %vm331, %v313, 0
    %v507 = vsel %vm331, %v314, 0
    %v510 = vsel %vm331, %v315, 0
    %v513 = vsel %vm331, %v316, 0
    %v516 = vsel %vm331, %v317, 0
    %v519 = vsel %vm331, %v318, 0
    %v522 = vsel %vm331, %v319, 0
    %524 = vmatprep.subr.mxu0 0.0
    %525 = vmatpush1.msra.mxu0 0.0
    %526 = vmatprep.subr.mxu0 0.0
    %527 = vmatpush1.msra.mxu0 0.0
    %528 = vmatprep.subr.mxu0 0.0
    %529 = vmatpush1.msra.mxu0 0.0
    %530 = vmatprep.subr.mxu0 0.0
    %531 = vmatpush1.msra.mxu0 0.0
    %532 = vmatprep.subr.mxu0 0.0
    %533 = vmatpush1.msra.mxu0 0.0
    %534 = vmatprep.subr.mxu0 0.0
    %535 = vmatpush1.msra.mxu0 0.0
    %536 = vmatprep.subr.mxu0 0.0
    %537 = vmatpush1.msra.mxu0 0.0
    %538 = vmatprep.subr.mxu0 0.0
    %539 = vmatpush1.msra.mxu0 0.0
    %540 = vmatprep.subr.mxu0 0.0
    %541 = vmatpush1.msra.mxu0 0.0
    %542 = vmatprep.subr.mxu0 0.0
    %543 = vmatpush1.msra.mxu0 0.0
    %544 = vmatprep.subr.mxu0 0.0
    %545 = vmatpush1.msra.mxu0 0.0
    %546 = vmatprep.subr.mxu0 0.0
    %547 = vmatpush1.msra.mxu0 0.0
    %548 = vmatprep.subr.mxu0 0.0
    %549 = vmatpush1.msra.mxu0 %v323
    %550 = vmatprep.subr.mxu0 0.0
    %551 = vmatpush1.msra.mxu0 %v322
    %552 = vmatprep.subr.mxu0 0.0
    %553 = vmatpush1.msra.mxu0 %v321
    %554 = vmatprep.subr.mxu0 0.0
    %555 = vmatpush1.msra.mxu0 %v320
    %556 = vmatprep.subr.mxu0 0.0
    %557 = vmatpush2.msra.mxu0 0.0
    %558 = vmatprep.subr.mxu0 0.0
    %559 = vmatpush2.msra.mxu0 0.0
    %560 = vmatprep.subr.mxu0 0.0
    %561 = vmatpush2.msra.mxu0 0.0
    %562 = vmatprep.subr.mxu0 0.0
    %563 = vmatpush2.msra.mxu0 0.0
    %564 = vmatprep.subr.mxu0 0.0
    %565 = vmatpush2.msra.mxu0 0.0
    %566 = vmatprep.subr.mxu0 0.0
    %567 = vmatpush2.msra.mxu0 0.0
    %568 = vmatprep.subr.mxu0 0.0
    %569 = vmatpush2.msra.mxu0 0.0
    %570 = vmatprep.subr.mxu0 0.0
    %571 = vmatpush2.msra.mxu0 0.0
    %572 = vmatprep.subr.mxu0 0.0
    %573 = vmatpush2.msra.mxu0 0.0
    %574 = vmatprep.subr.mxu0 0.0
    %575 = vmatpush2.msra.mxu0 0.0
    %576 = vmatprep.subr.mxu0 0.0
    %577 = vmatpush2.msra.mxu0 0.0
    %578 = vmatprep.subr.mxu0 0.0
    %579 = vmatpush2.msra.mxu0 0.0
    %580 = vmatprep.subr.mxu0 0.0
    %581 = vmatpush2.msra.mxu0 0.0
    %582 = vmatprep.subr.mxu0 0.0
    %583 = vmatpush2.msra.mxu0 0.0
    %584 = vmatprep.subr.mxu0 0.0
    %585 = vmatpush2.msra.mxu0 0.0
    %586 = vmatprep.subr.mxu0 0.0
    %587 = vmatpush2.msra.mxu0 0.0
    %588 = vmatprep.mubr.f32.mxu0 0.0
    %589 = vmatmul.mubr.f32.gmra.mxu0 %v333
    %v590 = vpop.f32.mrf.mxu0
    %v591 = vadd.f32 %v329, %v590
    %v592 = vpop.f32.mrf.mxu0
    %593 = vmatprep.mubr.f32.mxu0 0.0
    %594 = vmatmul.mubr.f32.gmra.mxu0 %v336
    %v595 = vpop.f32.mrf.mxu0
    %v596 = vadd.f32 %v329, %v595
    %v597 = vpop.f32.mrf.mxu0
    %598 = vmatprep.mubr.f32.mxu0 0.0
    %599 = vmatmul.mubr.f32.gmra.mxu0 %v339
    %v600 = vpop.f32.mrf.mxu0
    %v601 = vadd.f32 %v329, %v600
    %v602 = vpop.f32.mrf.mxu0
    %603 = vmatprep.mubr.f32.mxu0 0.0
    %604 = vmatmul.mubr.f32.gmra.mxu0 %v342
    %v605 = vpop.f32.mrf.mxu0
    %v606 = vadd.f32 %v329, %v605
    %v607 = vpop.f32.mrf.mxu0
    %608 = vmatprep.mubr.f32.mxu0 0.0
    %609 = vmatmul.mubr.f32.gmra.mxu0 %v345
    %v610 = vpop.f32.mrf.mxu0
    %v611 = vadd.f32 %v329, %v610
    %v612 = vpop.f32.mrf.mxu0
    %613 = vmatprep.mubr.f32.mxu0 0.0
    %614 = vmatmul.mubr.f32.gmra.mxu0 %v348
    %v615 = vpop.f32.mrf.mxu0
    %v616 = vadd.f32 %v329, %v615
    %v617 = vpop.f32.mrf.mxu0
    %618 = vmatprep.mubr.f32.mxu0 0.0
    %619 = vmatmul.mubr.f32.gmra.mxu0 %v351
    %v620 = vpop.f32.mrf.mxu0
    %v621 = vadd.f32 %v329, %v620
    %v622 = vpop.f32.mrf.mxu0
    %623 = vmatprep.mubr.f32.mxu0 0.0
    %624 = vmatmul.mubr.f32.gmra.mxu0 %v354
    %v625 = vpop.f32.mrf.mxu0
    %v626 = vadd.f32 %v329, %v625
    %v627 = vpop.f32.mrf.mxu0
    %628 = vmatprep.mubr.f32.mxu0 0.0
    %629 = vmatmul.mubr.f32.gmra.mxu0 %v357
    %v630 = vpop.f32.mrf.mxu0
    %v631 = vadd.f32 %v329, %v630
    %v632 = vpop.f32.mrf.mxu0
    %633 = vmatprep.mubr.f32.mxu0 0.0
    %634 = vmatmul.mubr.f32.gmra.mxu0 %v360
    %v635 = vpop.f32.mrf.mxu0
    %v636 = vadd.f32 %v329, %v635
    %v637 = vpop.f32.mrf.mxu0
    %638 = vmatprep.mubr.f32.mxu0 0.0
    %639 = vmatmul.mubr.f32.gmra.mxu0 %v363
    %v640 = vpop.f32.mrf.mxu0
    %v641 = vadd.f32 %v329, %v640
    %v642 = vpop.f32.mrf.mxu0
    %643 = vmatprep.mubr.f32.mxu0 0.0
    %644 = vmatmul.mubr.f32.gmra.mxu0 %v366
    %v645 = vpop.f32.mrf.mxu0
    %v646 = vadd.f32 %v329, %v645
    %v647 = vpop.f32.mrf.mxu0
    %648 = vmatprep.mubr.f32.mxu0 0.0
    %649 = vmatmul.mubr.f32.gmra.mxu0 %v369
    %v650 = vpop.f32.mrf.mxu0
    %v651 = vadd.f32 %v329, %v650
    %v652 = vpop.f32.mrf.mxu0
    %653 = vmatprep.mubr.f32.mxu0 0.0
    %654 = vmatmul.mubr.f32.gmra.mxu0 %v372
    %v655 = vpop.f32.mrf.mxu0
    %v656 = vadd.f32 %v329, %v655
    %v657 = vpop.f32.mrf.mxu0
    %658 = vmatprep.mubr.f32.mxu0 0.0
    %659 = vmatmul.mubr.f32.gmra.mxu0 %v375
    %v660 = vpop.f32.mrf.mxu0
    %v661 = vadd.f32 %v329, %v660
    %v662 = vpop.f32.mrf.mxu0
    %663 = vmatprep.mubr.f32.mxu0 0.0
    %664 = vmatmul.mubr.f32.gmra.mxu0 %v378
    %v665 = vpop.f32.mrf.mxu0
    %v666 = vadd.f32 %v329, %v665
    %v667 = vpop.f32.mrf.mxu0
    %668 = vmatprep.mubr.f32.mxu0 0.0
    %669 = vmatmul.mubr.f32.gmra.mxu0 %v381
    %v670 = vpop.f32.mrf.mxu0
    %v671 = vadd.f32 %v329, %v670
    %v672 = vpop.f32.mrf.mxu0
    %673 = vmatprep.mubr.f32.mxu0 0.0
    %674 = vmatmul.mubr.f32.gmra.mxu0 %v384
    %v675 = vpop.f32.mrf.mxu0
    %v676 = vadd.f32 %v329, %v675
    %v677 = vpop.f32.mrf.mxu0
    %678 = vmatprep.mubr.f32.mxu0 0.0
    %679 = vmatmul.mubr.f32.gmra.mxu0 %v387
    %v680 = vpop.f32.mrf.mxu0
    %v681 = vadd.f32 %v329, %v680
    %v682 = vpop.f32.mrf.mxu0
    %683 = vmatprep.mubr.f32.mxu0 0.0
    %684 = vmatmul.mubr.f32.gmra.mxu0 %v390
    %v685 = vpop.f32.mrf.mxu0
    %v686 = vadd.f32 %v329, %v685
    %v687 = vpop.f32.mrf.mxu0
    %688 = vmatprep.mubr.f32.mxu0 0.0
    %689 = vmatmul.mubr.f32.gmra.mxu0 %v393
    %v690 = vpop.f32.mrf.mxu0
    %v691 = vadd.f32 %v329, %v690
    %v692 = vpop.f32.mrf.mxu0
    %693 = vmatprep.mubr.f32.mxu0 0.0
    %694 = vmatmul.mubr.f32.gmra.mxu0 %v396
    %v695 = vpop.f32.mrf.mxu0
    %v696 = vadd.f32 %v329, %v695
    %v697 = vpop.f32.mrf.mxu0
    %698 = vmatprep.mubr.f32.mxu0 0.0
    %699 = vmatmul.mubr.f32.gmra.mxu0 %v399
    %v700 = vpop.f32.mrf.mxu0
    %v701 = vadd.f32 %v329, %v700
    %v702 = vpop.f32.mrf.mxu0
    %703 = vmatprep.mubr.f32.mxu0 0.0
    %704 = vmatmul.mubr.f32.gmra.mxu0 %v402
    %v705 = vpop.f32.mrf.mxu0
    %v706 = vadd.f32 %v329, %v705
    %v707 = vpop.f32.mrf.mxu0
    %708 = vmatprep.mubr.f32.mxu0 0.0
    %709 = vmatmul.mubr.f32.gmra.mxu0 %v405
    %v710 = vpop.f32.mrf.mxu0
    %v711 = vadd.f32 %v329, %v710
    %v712 = vpop.f32.mrf.mxu0
    %713 = vmatprep.mubr.f32.mxu0 0.0
    %714 = vmatmul.mubr.f32.gmra.mxu0 %v408
    %v715 = vpop.f32.mrf.mxu0
    %v716 = vadd.f32 %v329, %v715
    %v717 = vpop.f32.mrf.mxu0
    %718 = vmatprep.mubr.f32.mxu0 0.0
    %719 = vmatmul.mubr.f32.gmra.mxu0 %v411
    %v720 = vpop.f32.mrf.mxu0
    %v721 = vadd.f32 %v329, %v720
    %v722 = vpop.f32.mrf.mxu0
    %723 = vmatprep.mubr.f32.mxu0 0.0
    %724 = vmatmul.mubr.f32.gmra.mxu0 %v414
    %v725 = vpop.f32.mrf.mxu0
    %v726 = vadd.f32 %v329, %v725
    %v727 = vpop.f32.mrf.mxu0
    %728 = vmatprep.mubr.f32.mxu0 0.0
    %729 = vmatmul.mubr.f32.gmra.mxu0 %v417
    %v730 = vpop.f32.mrf.mxu0
    %v731 = vadd.f32 %v329, %v730
    %v732 = vpop.f32.mrf.mxu0
    %733 = vmatprep.mubr.f32.mxu0 0.0
    %734 = vmatmul.mubr.f32.gmra.mxu0 %v420
    %v735 = vpop.f32.mrf.mxu0
    %v736 = vadd.f32 %v329, %v735
    %v737 = vpop.f32.mrf.mxu0
    %738 = vmatprep.mubr.f32.mxu0 0.0
    %739 = vmatmul.mubr.f32.gmra.mxu0 %v423
    %v740 = vpop.f32.mrf.mxu0
    %v741 = vadd.f32 %v329, %v740
    %v742 = vpop.f32.mrf.mxu0
    %743 = vmatprep.mubr.f32.mxu0 0.0
    %744 = vmatmul.mubr.f32.gmra.mxu0 %v426
    %v745 = vpop.f32.mrf.mxu0
    %v746 = vadd.f32 %v329, %v745
    %v747 = vpop.f32.mrf.mxu0
    %748 = vmatprep.mubr.f32.mxu0 0.0
    %749 = vmatmul.mubr.f32.gmra.mxu0 %v429
    %v750 = vpop.f32.mrf.mxu0
    %v751 = vadd.f32 %v329, %v750
    %v752 = vpop.f32.mrf.mxu0
    %753 = vmatprep.mubr.f32.mxu0 0.0
    %754 = vmatmul.mubr.f32.gmra.mxu0 %v432
    %v755 = vpop.f32.mrf.mxu0
    %v756 = vadd.f32 %v329, %v755
    %v757 = vpop.f32.mrf.mxu0
    %758 = vmatprep.mubr.f32.mxu0 0.0
    %759 = vmatmul.mubr.f32.gmra.mxu0 %v435
    %v760 = vpop.f32.mrf.mxu0
    %v761 = vadd.f32 %v329, %v760
    %v762 = vpop.f32.mrf.mxu0
    %763 = vmatprep.mubr.f32.mxu0 0.0
    %764 = vmatmul.mubr.f32.gmra.mxu0 %v438
    %v765 = vpop.f32.mrf.mxu0
    %v766 = vadd.f32 %v329, %v765
    %v767 = vpop.f32.mrf.mxu0
    %768 = vmatprep.mubr.f32.mxu0 0.0
    %769 = vmatmul.mubr.f32.gmra.mxu0 %v441
    %v770 = vpop.f32.mrf.mxu0
    %v771 = vadd.f32 %v329, %v770
    %v772 = vpop.f32.mrf.mxu0
    %773 = vmatprep.mubr.f32.mxu0 0.0
    %774 = vmatmul.mubr.f32.gmra.mxu0 %v444
    %v775 = vpop.f32.mrf.mxu0
    %v776 = vadd.f32 %v329, %v775
    %v777 = vpop.f32.mrf.mxu0
    %778 = vmatprep.mubr.f32.mxu0 0.0
    %779 = vmatmul.mubr.f32.gmra.mxu0 %v447
    %v780 = vpop.f32.mrf.mxu0
    %v781 = vadd.f32 %v329, %v780
    %v782 = vpop.f32.mrf.mxu0
    %783 = vmatprep.mubr.f32.mxu0 0.0
    %784 = vmatmul.mubr.f32.gmra.mxu0 %v450
    %v785 = vpop.f32.mrf.mxu0
    %v786 = vadd.f32 %v329, %v785
    %v787 = vpop.f32.mrf.mxu0
    %788 = vmatprep.mubr.f32.mxu0 0.0
    %789 = vmatmul.mubr.f32.gmra.mxu0 %v453
    %v790 = vpop.f32.mrf.mxu0
    %v791 = vadd.f32 %v329, %v790
    %v792 = vpop.f32.mrf.mxu0
    %793 = vmatprep.mubr.f32.mxu0 0.0
    %794 = vmatmul.mubr.f32.gmra.mxu0 %v456
    %v795 = vpop.f32.mrf.mxu0
    %v796 = vadd.f32 %v329, %v795
    %v797 = vpop.f32.mrf.mxu0
    %798 = vmatprep.mubr.f32.mxu0 0.0
    %799 = vmatmul.mubr.f32.gmra.mxu0 %v459
    %v800 = vpop.f32.mrf.mxu0
    %v801 = vadd.f32 %v329, %v800
    %v802 = vpop.f32.mrf.mxu0
    %803 = vmatprep.mubr.f32.mxu0 0.0
    %804 = vmatmul.mubr.f32.gmra.mxu0 %v462
    %v805 = vpop.f32.mrf.mxu0
    %v806 = vadd.f32 %v329, %v805
    %v807 = vpop.f32.mrf.mxu0
    %808 = vmatprep.mubr.f32.mxu0 0.0
    %809 = vmatmul.mubr.f32.gmra.mxu0 %v465
    %v810 = vpop.f32.mrf.mxu0
    %v811 = vadd.f32 %v329, %v810
    %v812 = vpop.f32.mrf.mxu0
    %813 = vmatprep.mubr.f32.mxu0 0.0
    %814 = vmatmul.mubr.f32.gmra.mxu0 %v468
    %v815 = vpop.f32.mrf.mxu0
    %v816 = vadd.f32 %v329, %v815
    %v817 = vpop.f32.mrf.mxu0
    %818 = vmatprep.mubr.f32.mxu0 0.0
    %819 = vmatmul.mubr.f32.gmra.mxu0 %v471
    %v820 = vpop.f32.mrf.mxu0
    %v821 = vadd.f32 %v329, %v820
    %v822 = vpop.f32.mrf.mxu0
    %823 = vmatprep.mubr.f32.mxu0 0.0
    %824 = vmatmul.mubr.f32.gmra.mxu0 %v474
    %v825 = vpop.f32.mrf.mxu0
    %v826 = vadd.f32 %v329, %v825
    %v827 = vpop.f32.mrf.mxu0
    %828 = vmatprep.mubr.f32.mxu0 0.0
    %829 = vmatmul.mubr.f32.gmra.mxu0 %v477
    %v830 = vpop.f32.mrf.mxu0
    %v831 = vadd.f32 %v329, %v830
    %v832 = vpop.f32.mrf.mxu0
    %833 = vmatprep.mubr.f32.mxu0 0.0
    %834 = vmatmul.mubr.f32.gmra.mxu0 %v480
    %v835 = vpop.f32.mrf.mxu0
    %v836 = vadd.f32 %v329, %v835
    %v837 = vpop.f32.mrf.mxu0
    %838 = vmatprep.mubr.f32.mxu0 0.0
    %839 = vmatmul.mubr.f32.gmra.mxu0 %v483
    %v840 = vpop.f32.mrf.mxu0
    %v841 = vadd.f32 %v329, %v840
    %v842 = vpop.f32.mrf.mxu0
    %843 = vmatprep.mubr.f32.mxu0 0.0
    %844 = vmatmul.mubr.f32.gmra.mxu0 %v486
    %v845 = vpop.f32.mrf.mxu0
    %v846 = vadd.f32 %v329, %v845
    %v847 = vpop.f32.mrf.mxu0
    %848 = vmatprep.mubr.f32.mxu0 0.0
    %849 = vmatmul.mubr.f32.gmra.mxu0 %v489
    %v850 = vpop.f32.mrf.mxu0
    %v851 = vadd.f32 %v329, %v850
    %v852 = vpop.f32.mrf.mxu0
    %853 = vmatprep.mubr.f32.mxu0 0.0
    %854 = vmatmul.mubr.f32.gmra.mxu0 %v492
    %v855 = vpop.f32.mrf.mxu0
    %v856 = vadd.f32 %v329, %v855
    %v857 = vpop.f32.mrf.mxu0
    %858 = vmatprep.mubr.f32.mxu0 0.0
    %859 = vmatmul.mubr.f32.gmra.mxu0 %v495
    %v860 = vpop.f32.mrf.mxu0
    %v861 = vadd.f32 %v329, %v860
    %v862 = vpop.f32.mrf.mxu0
    %863 = vmatprep.mubr.f32.mxu0 0.0
    %864 = vmatmul.mubr.f32.gmra.mxu0 %v498
    %v865 = vpop.f32.mrf.mxu0
    %v866 = vadd.f32 %v329, %v865
    %v867 = vpop.f32.mrf.mxu0
    %868 = vmatprep.mubr.f32.mxu0 0.0
    %869 = vmatmul.mubr.f32.gmra.mxu0 %v501
    %v870 = vpop.f32.mrf.mxu0
    %v871 = vadd.f32 %v329, %v870
    %v872 = vpop.f32.mrf.mxu0
    %873 = vmatprep.mubr.f32.mxu0 0.0
    %874 = vmatmul.mubr.f32.gmra.mxu0 %v504
    %v875 = vpop.f32.mrf.mxu0
    %v876 = vadd.f32 %v329, %v875
    %v877 = vpop.f32.mrf.mxu0
    %878 = vmatprep.mubr.f32.mxu0 0.0
    %879 = vmatmul.mubr.f32.gmra.mxu0 %v507
    %v880 = vpop.f32.mrf.mxu0
    %v881 = vadd.f32 %v329, %v880
    %v882 = vpop.f32.mrf.mxu0
    %883 = vmatprep.mubr.f32.mxu0 0.0
    %884 = vmatmul.mubr.f32.gmra.mxu0 %v510
    %v885 = vpop.f32.mrf.mxu0
    %v886 = vadd.f32 %v329, %v885
    %v887 = vpop.f32.mrf.mxu0
    %888 = vmatprep.mubr.f32.mxu0 0.0
    %889 = vmatmul.mubr.f32.gmra.mxu0 %v513
    %v890 = vpop.f32.mrf.mxu0
    %v891 = vadd.f32 %v329, %v890
    %v892 = vpop.f32.mrf.mxu0
    %893 = vmatprep.mubr.f32.mxu0 0.0
    %894 = vmatmul.mubr.f32.gmra.mxu0 %v516
    %v895 = vpop.f32.mrf.mxu0
    %v896 = vadd.f32 %v329, %v895
    %v897 = vpop.f32.mrf.mxu0
    %898 = vmatprep.mubr.f32.mxu0 0.0
    %899 = vmatmul.mubr.f32.gmra.mxu0 %v519
    %v900 = vpop.f32.mrf.mxu0
    %v901 = vadd.f32 %v329, %v900
    %v902 = vpop.f32.mrf.mxu0
    %903 = vmatprep.mubr.f32.mxu0 0.0
    %904 = vmatmul.mubr.f32.gmra.mxu0 %v522
    %v905 = vpop.f32.mrf.mxu0
    %v906 = vadd.f32 %v329, %v905
    %v907 = vpop.f32.mrf.mxu0
    %908 = vdwg.mxu0
    %v909 = vmul.f32 %v178, %v591
    %v910 = vmul.f32 %v183, %v596
    %v911 = vmul.f32 %v188, %v601
    %v912 = vmul.f32 %v193, %v606
    %v913 = vmul.f32 %v198, %v611
    %v914 = vmul.f32 %v203, %v616
    %v915 = vmul.f32 %v208, %v621
    %v916 = vmul.f32 %v213, %v626
    %v917 = vmul.f32 %v218, %v631
    %v918 = vmul.f32 %v223, %v636
    %v919 = vmul.f32 %v228, %v641
    %v920 = vmul.f32 %v233, %v646
    %v921 = vmul.f32 %v238, %v651
    %v922 = vmul.f32 %v243, %v656
    %v923 = vmul.f32 %v248, %v661
    %v924 = vmul.f32 %v253, %v666
    %v925 = vmul.f32 %v178, %v671
    %v926 = vmul.f32 %v183, %v676
    %v927 = vmul.f32 %v188, %v681
    %v928 = vmul.f32 %v193, %v686
    %v929 = vmul.f32 %v198, %v691
    %v930 = vmul.f32 %v203, %v696
    %v931 = vmul.f32 %v208, %v701
    %v932 = vmul.f32 %v213, %v706
    %v933 = vmul.f32 %v218, %v711
    %v934 = vmul.f32 %v223, %v716
    %v935 = vmul.f32 %v228, %v721
    %v936 = vmul.f32 %v233, %v726
    %v937 = vmul.f32 %v238, %v731
    %v938 = vmul.f32 %v243, %v736
    %v939 = vmul.f32 %v248, %v741
    %v940 = vmul.f32 %v253, %v746
    %v941 = vmul.f32 %v178, %v751
    %v942 = vmul.f32 %v183, %v756
    %v943 = vmul.f32 %v188, %v761
    %v944 = vmul.f32 %v193, %v766
    %v945 = vmul.f32 %v198, %v771
    %v946 = vmul.f32 %v203, %v776
    %v947 = vmul.f32 %v208, %v781
    %v948 = vmul.f32 %v213, %v786
    %v949 = vmul.f32 %v218, %v791
    %v950 = vmul.f32 %v223, %v796
    %v951 = vmul.f32 %v228, %v801
    %v952 = vmul.f32 %v233, %v806
    %v953 = vmul.f32 %v238, %v811
    %v954 = vmul.f32 %v243, %v816
    %v955 = vmul.f32 %v248, %v821
    %v956 = vmul.f32 %v253, %v826
    %v957 = vmul.f32 %v178, %v831
    %v958 = vmul.f32 %v183, %v836
    %v959 = vmul.f32 %v188, %v841
    %v960 = vmul.f32 %v193, %v846
    %v961 = vmul.f32 %v198, %v851
    %v962 = vmul.f32 %v203, %v856
    %v963 = vmul.f32 %v208, %v861
    %v964 = vmul.f32 %v213, %v866
    %v965 = vmul.f32 %v218, %v871
    %v966 = vmul.f32 %v223, %v876
    %v967 = vmul.f32 %v228, %v881
    %v968 = vmul.f32 %v233, %v886
    %v969 = vmul.f32 %v238, %v891
    %v970 = vmul.f32 %v243, %v896
    %v971 = vmul.f32 %v248, %v901
    %v972 = vmul.f32 %v253, %v906
    %v973 = vsel %vm331, %v909, 0.0
    %974 = vadd.xlane.f32.xlu0 %v973
    %v975 = vpop.xlane.xlu0 %974
    %v976 = vsel %vm331, %v910, 0.0
    %977 = vadd.xlane.f32.xlu0 %v976
    %v978 = vpop.xlane.xlu0 %977
    %v979 = vsel %vm331, %v911, 0.0
    %980 = vadd.xlane.f32.xlu0 %v979
    %v981 = vpop.xlane.xlu0 %980
    %v982 = vsel %vm331, %v912, 0.0
    %983 = vadd.xlane.f32.xlu0 %v982
    %v984 = vpop.xlane.xlu0 %983
    %v985 = vsel %vm331, %v913, 0.0
    %986 = vadd.xlane.f32.xlu0 %v985
    %v987 = vpop.xlane.xlu0 %986
    %v988 = vsel %vm331, %v914, 0.0
    %989 = vadd.xlane.f32.xlu0 %v988
    %v990 = vpop.xlane.xlu0 %989
    %v991 = vsel %vm331, %v915, 0.0
    %992 = vadd.xlane.f32.xlu0 %v991
    %v993 = vpop.xlane.xlu0 %992
    %v994 = vsel %vm331, %v916, 0.0
    %995 = vadd.xlane.f32.xlu0 %v994
    %v996 = vpop.xlane.xlu0 %995
    %v997 = vsel %vm331, %v917, 0.0
    %998 = vadd.xlane.f32.xlu0 %v997
    %v999 = vpop.xlane.xlu0 %998
    %v1000 = vsel %vm331, %v918, 0.0
    %1001 = vadd.xlane.f32.xlu0 %v1000
    %v1002 = vpop.xlane.xlu0 %1001
    %v1003 = vsel %vm331, %v919, 0.0
    %1004 = vadd.xlane.f32.xlu0 %v1003
    %v1005 = vpop.xlane.xlu0 %1004
    %v1006 = vsel %vm331, %v920, 0.0
    %1007 = vadd.xlane.f32.xlu0 %v1006
    %v1008 = vpop.xlane.xlu0 %1007
    %v1009 = vsel %vm331, %v921, 0.0
    %1010 = vadd.xlane.f32.xlu0 %v1009
    %v1011 = vpop.xlane.xlu0 %1010
    %v1012 = vsel %vm331, %v922, 0.0
    %1013 = vadd.xlane.f32.xlu0 %v1012
    %v1014 = vpop.xlane.xlu0 %1013
    %v1015 = vsel %vm331, %v923, 0.0
    %1016 = vadd.xlane.f32.xlu0 %v1015
    %v1017 = vpop.xlane.xlu0 %1016
    %v1018 = vsel %vm331, %v924, 0.0
    %1019 = vadd.xlane.f32.xlu0 %v1018
    %v1020 = vpop.xlane.xlu0 %1019
    %v1021 = vsel %vm331, %v925, 0.0
    %1022 = vadd.xlane.f32.xlu0 %v1021
    %v1023 = vpop.xlane.xlu0 %1022
    %v1024 = vsel %vm331, %v926, 0.0
    %1025 = vadd.xlane.f32.xlu0 %v1024
    %v1026 = vpop.xlane.xlu0 %1025
    %v1027 = vsel %vm331, %v927, 0.0
    %1028 = vadd.xlane.f32.xlu0 %v1027
    %v1029 = vpop.xlane.xlu0 %1028
    %v1030 = vsel %vm331, %v928, 0.0
    %1031 = vadd.xlane.f32.xlu0 %v1030
    %v1032 = vpop.xlane.xlu0 %1031
    %v1033 = vsel %vm331, %v929, 0.0
    %1034 = vadd.xlane.f32.xlu0 %v1033
    %v1035 = vpop.xlane.xlu0 %1034
    %v1036 = vsel %vm331, %v930, 0.0
    %1037 = vadd.xlane.f32.xlu0 %v1036
    %v1038 = vpop.xlane.xlu0 %1037
    %v1039 = vsel %vm331, %v931, 0.0
    %1040 = vadd.xlane.f32.xlu0 %v1039
    %v1041 = vpop.xlane.xlu0 %1040
    %v1042 = vsel %vm331, %v932, 0.0
    %1043 = vadd.xlane.f32.xlu0 %v1042
    %v1044 = vpop.xlane.xlu0 %1043
    %v1045 = vsel %vm331, %v933, 0.0
    %1046 = vadd.xlane.f32.xlu0 %v1045
    %v1047 = vpop.xlane.xlu0 %1046
    %v1048 = vsel %vm331, %v934, 0.0
    %1049 = vadd.xlane.f32.xlu0 %v1048
    %v1050 = vpop.xlane.xlu0 %1049
    %v1051 = vsel %vm331, %v935, 0.0
    %1052 = vadd.xlane.f32.xlu0 %v1051
    %v1053 = vpop.xlane.xlu0 %1052
    %v1054 = vsel %vm331, %v936, 0.0
    %1055 = vadd.xlane.f32.xlu0 %v1054
    %v1056 = vpop.xlane.xlu0 %1055
    %v1057 = vsel %vm331, %v937, 0.0
    %1058 = vadd.xlane.f32.xlu0 %v1057
    %v1059 = vpop.xlane.xlu0 %1058
    %v1060 = vsel %vm331, %v938, 0.0
    %1061 = vadd.xlane.f32.xlu0 %v1060
    %v1062 = vpop.xlane.xlu0 %1061
    %v1063 = vsel %vm331, %v939, 0.0
    %1064 = vadd.xlane.f32.xlu0 %v1063
    %v1065 = vpop.xlane.xlu0 %1064
    %v1066 = vsel %vm331, %v940, 0.0
    %1067 = vadd.xlane.f32.xlu0 %v1066
    %v1068 = vpop.xlane.xlu0 %1067
    %v1069 = vsel %vm331, %v941, 0.0
    %1070 = vadd.xlane.f32.xlu0 %v1069
    %v1071 = vpop.xlane.xlu0 %1070
    %v1072 = vsel %vm331, %v942, 0.0
    %1073 = vadd.xlane.f32.xlu0 %v1072
    %v1074 = vpop.xlane.xlu0 %1073
    %v1075 = vsel %vm331, %v943, 0.0
    %1076 = vadd.xlane.f32.xlu0 %v1075
    %v1077 = vpop.xlane.xlu0 %1076
    %v1078 = vsel %vm331, %v944, 0.0
    %1079 = vadd.xlane.f32.xlu0 %v1078
    %v1080 = vpop.xlane.xlu0 %1079
    %v1081 = vsel %vm331, %v945, 0.0
    %1082 = vadd.xlane.f32.xlu0 %v1081
    %v1083 = vpop.xlane.xlu0 %1082
    %v1084 = vsel %vm331, %v946, 0.0
    %1085 = vadd.xlane.f32.xlu0 %v1084
    %v1086 = vpop.xlane.xlu0 %1085
    %v1087 = vsel %vm331, %v947, 0.0
    %1088 = vadd.xlane.f32.xlu0 %v1087
    %v1089 = vpop.xlane.xlu0 %1088
    %v1090 = vsel %vm331, %v948, 0.0
    %1091 = vadd.xlane.f32.xlu0 %v1090
    %v1092 = vpop.xlane.xlu0 %1091
    %v1093 = vsel %vm331, %v949, 0.0
    %1094 = vadd.xlane.f32.xlu0 %v1093
    %v1095 = vpop.xlane.xlu0 %1094
    %v1096 = vsel %vm331, %v950, 0.0
    %1097 = vadd.xlane.f32.xlu0 %v1096
    %v1098 = vpop.xlane.xlu0 %1097
    %v1099 = vsel %vm331, %v951, 0.0
    %1100 = vadd.xlane.f32.xlu0 %v1099
    %v1101 = vpop.xlane.xlu0 %1100
    %v1102 = vsel %vm331, %v952, 0.0
    %1103 = vadd.xlane.f32.xlu0 %v1102
    %v1104 = vpop.xlane.xlu0 %1103
    %v1105 = vsel %vm331, %v953, 0.0
    %1106 = vadd.xlane.f32.xlu0 %v1105
    %v1107 = vpop.xlane.xlu0 %1106
    %v1108 = vsel %vm331, %v954, 0.0
    %1109 = vadd.xlane.f32.xlu0 %v1108
    %v1110 = vpop.xlane.xlu0 %1109
    %v1111 = vsel %vm331, %v955, 0.0
    %1112 = vadd.xlane.f32.xlu0 %v1111
    %v1113 = vpop.xlane.xlu0 %1112
    %v1114 = vsel %vm331, %v956, 0.0
    %1115 = vadd.xlane.f32.xlu0 %v1114
    %v1116 = vpop.xlane.xlu0 %1115
    %v1117 = vsel %vm331, %v957, 0.0
    %1118 = vadd.xlane.f32.xlu0 %v1117
    %v1119 = vpop.xlane.xlu0 %1118
    %v1120 = vsel %vm331, %v958, 0.0
    %1121 = vadd.xlane.f32.xlu0 %v1120
    %v1122 = vpop.xlane.xlu0 %1121
    %v1123 = vsel %vm331, %v959, 0.0
    %1124 = vadd.xlane.f32.xlu0 %v1123
    %v1125 = vpop.xlane.xlu0 %1124
    %v1126 = vsel %vm331, %v960, 0.0
    %1127 = vadd.xlane.f32.xlu0 %v1126
    %v1128 = vpop.xlane.xlu0 %1127
    %v1129 = vsel %vm331, %v961, 0.0
    %1130 = vadd.xlane.f32.xlu0 %v1129
    %v1131 = vpop.xlane.xlu0 %1130
    %v1132 = vsel %vm331, %v962, 0.0
    %1133 = vadd.xlane.f32.xlu0 %v1132
    %v1134 = vpop.xlane.xlu0 %1133
    %v1135 = vsel %vm331, %v963, 0.0
    %1136 = vadd.xlane.f32.xlu0 %v1135
    %v1137 = vpop.xlane.xlu0 %1136
    %v1138 = vsel %vm331, %v964, 0.0
    %1139 = vadd.xlane.f32.xlu0 %v1138
    %v1140 = vpop.xlane.xlu0 %1139
    %v1141 = vsel %vm331, %v965, 0.0
    %1142 = vadd.xlane.f32.xlu0 %v1141
    %v1143 = vpop.xlane.xlu0 %1142
    %v1144 = vsel %vm331, %v966, 0.0
    %1145 = vadd.xlane.f32.xlu0 %v1144
    %v1146 = vpop.xlane.xlu0 %1145
    %v1147 = vsel %vm331, %v967, 0.0
    %1148 = vadd.xlane.f32.xlu0 %v1147
    %v1149 = vpop.xlane.xlu0 %1148
    %v1150 = vsel %vm331, %v968, 0.0
    %1151 = vadd.xlane.f32.xlu0 %v1150
    %v1152 = vpop.xlane.xlu0 %1151
    %v1153 = vsel %vm331, %v969, 0.0
    %1154 = vadd.xlane.f32.xlu0 %v1153
    %v1155 = vpop.xlane.xlu0 %1154
    %v1156 = vsel %vm331, %v970, 0.0
    %1157 = vadd.xlane.f32.xlu0 %v1156
    %v1158 = vpop.xlane.xlu0 %1157
    %v1159 = vsel %vm331, %v971, 0.0
    %1160 = vadd.xlane.f32.xlu0 %v1159
    %v1161 = vpop.xlane.xlu0 %1160
    %v1162 = vsel %vm331, %v972, 0.0
    %1163 = vadd.xlane.f32.xlu0 %v1162
    %v1164 = vpop.xlane.xlu0 %1163
    %v1165 = vadd.f32 %v975, %v1023
    %v1166 = vadd.f32 %v1165, %v1071
    %v1167 = vadd.f32 %v1166, %v1119
    %v1168 = vadd.f32 %v978, %v1026
    %v1169 = vadd.f32 %v1168, %v1074
    %v1170 = vadd.f32 %v1169, %v1122
    %v1171 = vadd.f32 %v981, %v1029
    %v1172 = vadd.f32 %v1171, %v1077
    %v1173 = vadd.f32 %v1172, %v1125
    %v1174 = vadd.f32 %v984, %v1032
    %v1175 = vadd.f32 %v1174, %v1080
    %v1176 = vadd.f32 %v1175, %v1128
    %v1177 = vadd.f32 %v987, %v1035
    %v1178 = vadd.f32 %v1177, %v1083
    %v1179 = vadd.f32 %v1178, %v1131
    %v1180 = vadd.f32 %v990, %v1038
    %v1181 = vadd.f32 %v1180, %v1086
    %v1182 = vadd.f32 %v1181, %v1134
    %v1183 = vadd.f32 %v993, %v1041
    %v1184 = vadd.f32 %v1183, %v1089
    %v1185 = vadd.f32 %v1184, %v1137
    %v1186 = vadd.f32 %v996, %v1044
    %v1187 = vadd.f32 %v1186, %v1092
    %v1188 = vadd.f32 %v1187, %v1140
    %v1189 = vadd.f32 %v999, %v1047
    %v1190 = vadd.f32 %v1189, %v1095
    %v1191 = vadd.f32 %v1190, %v1143
    %v1192 = vadd.f32 %v1002, %v1050
    %v1193 = vadd.f32 %v1192, %v1098
    %v1194 = vadd.f32 %v1193, %v1146
    %v1195 = vadd.f32 %v1005, %v1053
    %v1196 = vadd.f32 %v1195, %v1101
    %v1197 = vadd.f32 %v1196, %v1149
    %v1198 = vadd.f32 %v1008, %v1056
    %v1199 = vadd.f32 %v1198, %v1104
    %v1200 = vadd.f32 %v1199, %v1152
    %v1201 = vadd.f32 %v1011, %v1059
    %v1202 = vadd.f32 %v1201, %v1107
    %v1203 = vadd.f32 %v1202, %v1155
    %v1204 = vadd.f32 %v1014, %v1062
    %v1205 = vadd.f32 %v1204, %v1110
    %v1206 = vadd.f32 %v1205, %v1158
    %v1207 = vadd.f32 %v1017, %v1065
    %v1208 = vadd.f32 %v1207, %v1113
    %v1209 = vadd.f32 %v1208, %v1161
    %v1210 = vadd.f32 %v1020, %v1068
    %v1211 = vadd.f32 %v1210, %v1116
    %v1212 = vadd.f32 %v1211, %v1164
    %v1213 = vrcp.pop 4.0
    %v1214 = vmul.f32 %v1167, %v1213
    %v1215 = vmul.f32 %v1170, %v1213
    %v1216 = vmul.f32 %v1173, %v1213
    %v1217 = vmul.f32 %v1176, %v1213
    %v1218 = vmul.f32 %v1179, %v1213
    %v1219 = vmul.f32 %v1182, %v1213
    %v1220 = vmul.f32 %v1185, %v1213
    %v1221 = vmul.f32 %v1188, %v1213
    %v1222 = vmul.f32 %v1191, %v1213
    %v1223 = vmul.f32 %v1194, %v1213
    %v1224 = vmul.f32 %v1197, %v1213
    %v1225 = vmul.f32 %v1200, %v1213
    %v1226 = vmul.f32 %v1203, %v1213
    %v1227 = vmul.f32 %v1206, %v1213
    %v1228 = vmul.f32 %v1209, %v1213
    %v1229 = vmul.f32 %v1212, %v1213
    %v1230 = vmul.f32 %v1214, 2.0
    %v1231 = vmul.f32 %v1215, 2.0
    %v1232 = vmul.f32 %v1216, 2.0
    %v1233 = vmul.f32 %v1217, 2.0
    %v1234 = vmul.f32 %v1218, 2.0
    %v1235 = vmul.f32 %v1219, 2.0
    %v1236 = vmul.f32 %v1220, 2.0
    %v1237 = vmul.f32 %v1221, 2.0
    %v1238 = vmul.f32 %v1222, 2.0
    %v1239 = vmul.f32 %v1223, 2.0
    %v1240 = vmul.f32 %v1224, 2.0
    %v1241 = vmul.f32 %v1225, 2.0
    %v1242 = vmul.f32 %v1226, 2.0
    %v1243 = vmul.f32 %v1227, 2.0
    %v1244 = vmul.f32 %v1228, 2.0
    %v1245 = vmul.f32 %v1229, 2.0
    %v1246 = vsub.f32 %v1230, %v975
    %v1247 = vsub.f32 %v1231, %v978
    %v1248 = vsub.f32 %v1232, %v981
    %v1249 = vsub.f32 %v1233, %v984
    %v1250 = vsub.f32 %v1234, %v987
    %v1251 = vsub.f32 %v1235, %v990
    %v1252 = vsub.f32 %v1236, %v993
    %v1253 = vsub.f32 %v1237, %v996
    %v1254 = vsub.f32 %v1238, %v999
    %v1255 = vsub.f32 %v1239, %v1002
    %v1256 = vsub.f32 %v1240, %v1005
    %v1257 = vsub.f32 %v1241, %v1008
    %v1258 = vsub.f32 %v1242, %v1011
    %v1259 = vsub.f32 %v1243, %v1014
    %v1260 = vsub.f32 %v1244, %v1017
    %v1261 = vsub.f32 %v1245, %v1020
    %v1262 = vsub.f32 %v1230, %v1023
    %v1263 = vsub.f32 %v1231, %v1026
    %v1264 = vsub.f32 %v1232, %v1029
    %v1265 = vsub.f32 %v1233, %v1032
    %v1266 = vsub.f32 %v1234, %v1035
    %v1267 = vsub.f32 %v1235, %v1038
    %v1268 = vsub.f32 %v1236, %v1041
    %v1269 = vsub.f32 %v1237, %v1044
    %v1270 = vsub.f32 %v1238, %v1047
    %v1271 = vsub.f32 %v1239, %v1050
    %v1272 = vsub.f32 %v1240, %v1053
    %v1273 = vsub.f32 %v1241, %v1056
    %v1274 = vsub.f32 %v1242, %v1059
    %v1275 = vsub.f32 %v1243, %v1062
    %v1276 = vsub.f32 %v1244, %v1065
    %v1277 = vsub.f32 %v1245, %v1068
    %v1278 = vsub.f32 %v1230, %v1071
    %v1279 = vsub.f32 %v1231, %v1074
    %v1280 = vsub.f32 %v1232, %v1077
    %v1281 = vsub.f32 %v1233, %v1080
    %v1282 = vsub.f32 %v1234, %v1083
    %v1283 = vsub.f32 %v1235, %v1086
    %v1284 = vsub.f32 %v1236, %v1089
    %v1285 = vsub.f32 %v1237, %v1092
    %v1286 = vsub.f32 %v1238, %v1095
    %v1287 = vsub.f32 %v1239, %v1098
    %v1288 = vsub.f32 %v1240, %v1101
    %v1289 = vsub.f32 %v1241, %v1104
    %v1290 = vsub.f32 %v1242, %v1107
    %v1291 = vsub.f32 %v1243, %v1110
    %v1292 = vsub.f32 %v1244, %v1113
    %v1293 = vsub.f32 %v1245, %v1116
    %v1294 = vsub.f32 %v1230, %v1119
    %v1295 = vsub.f32 %v1231, %v1122
    %v1296 = vsub.f32 %v1232, %v1125
    %v1297 = vsub.f32 %v1233, %v1128
    %v1298 = vsub.f32 %v1234, %v1131
    %v1299 = vsub.f32 %v1235, %v1134
    %v1300 = vsub.f32 %v1236, %v1137
    %v1301 = vsub.f32 %v1237, %v1140
    %v1302 = vsub.f32 %v1238, %v1143
    %v1303 = vsub.f32 %v1239, %v1146
    %v1304 = vsub.f32 %v1240, %v1149
    %v1305 = vsub.f32 %v1241, %v1152
    %v1306 = vsub.f32 %v1242, %v1155
    %v1307 = vsub.f32 %v1243, %v1158
    %v1308 = vsub.f32 %v1244, %v1161
    %v1309 = vsub.f32 %v1245, %v1164
    %v1310 = vmax.f32 %v1246, %v1262
    %v1311 = vmax.f32 %v1310, %v1278
    %v1312 = vmax.f32 %v1311, %v1294
    %v1313 = vmax.f32 %v1247, %v1263
    %v1314 = vmax.f32 %v1313, %v1279
    %v1315 = vmax.f32 %v1314, %v1295
    %v1316 = vmax.f32 %v1248, %v1264
    %v1317 = vmax.f32 %v1316, %v1280
    %v1318 = vmax.f32 %v1317, %v1296
    %v1319 = vmax.f32 %v1249, %v1265
    %v1320 = vmax.f32 %v1319, %v1281
    %v1321 = vmax.f32 %v1320, %v1297
    %v1322 = vmax.f32 %v1250, %v1266
    %v1323 = vmax.f32 %v1322, %v1282
    %v1324 = vmax.f32 %v1323, %v1298
    %v1325 = vmax.f32 %v1251, %v1267
    %v1326 = vmax.f32 %v1325, %v1283
    %v1327 = vmax.f32 %v1326, %v1299
    %v1328 = vmax.f32 %v1252, %v1268
    %v1329 = vmax.f32 %v1328, %v1284
    %v1330 = vmax.f32 %v1329, %v1300
    %v1331 = vmax.f32 %v1253, %v1269
    %v1332 = vmax.f32 %v1331, %v1285
    %v1333 = vmax.f32 %v1332, %v1301
    %v1334 = vmax.f32 %v1254, %v1270
    %v1335 = vmax.f32 %v1334, %v1286
    %v1336 = vmax.f32 %v1335, %v1302
    %v1337 = vmax.f32 %v1255, %v1271
    %v1338 = vmax.f32 %v1337, %v1287
    %v1339 = vmax.f32 %v1338, %v1303
    %v1340 = vmax.f32 %v1256, %v1272
    %v1341 = vmax.f32 %v1340, %v1288
    %v1342 = vmax.f32 %v1341, %v1304
    %v1343 = vmax.f32 %v1257, %v1273
    %v1344 = vmax.f32 %v1343, %v1289
    %v1345 = vmax.f32 %v1344, %v1305
    %v1346 = vmax.f32 %v1258, %v1274
    %v1347 = vmax.f32 %v1346, %v1290
    %v1348 = vmax.f32 %v1347, %v1306
    %v1349 = vmax.f32 %v1259, %v1275
    %v1350 = vmax.f32 %v1349, %v1291
    %v1351 = vmax.f32 %v1350, %v1307
    %v1352 = vmax.f32 %v1260, %v1276
    %v1353 = vmax.f32 %v1352, %v1292
    %v1354 = vmax.f32 %v1353, %v1308
    %v1355 = vmax.f32 %v1261, %v1277
    %v1356 = vmax.f32 %v1355, %v1293
    %v1357 = vmax.f32 %v1356, %v1309
    %v1358 = vsub.f32 %v1246, %v1312
    %v1359 = vsub.f32 %v1247, %v1315
    %v1360 = vsub.f32 %v1248, %v1318
    %v1361 = vsub.f32 %v1249, %v1321
    %v1362 = vsub.f32 %v1250, %v1324
    %v1363 = vsub.f32 %v1251, %v1327
    %v1364 = vsub.f32 %v1252, %v1330
    %v1365 = vsub.f32 %v1253, %v1333
    %v1366 = vsub.f32 %v1254, %v1336
    %v1367 = vsub.f32 %v1255, %v1339
    %v1368 = vsub.f32 %v1256, %v1342
    %v1369 = vsub.f32 %v1257, %v1345
    %v1370 = vsub.f32 %v1258, %v1348
    %v1371 = vsub.f32 %v1259, %v1351
    %v1372 = vsub.f32 %v1260, %v1354
    %v1373 = vsub.f32 %v1261, %v1357
    %v1374 = vsub.f32 %v1262, %v1312
    %v1375 = vsub.f32 %v1263, %v1315
    %v1376 = vsub.f32 %v1264, %v1318
    %v1377 = vsub.f32 %v1265, %v1321
    %v1378 = vsub.f32 %v1266, %v1324
    %v1379 = vsub.f32 %v1267, %v1327
    %v1380 = vsub.f32 %v1268, %v1330
    %v1381 = vsub.f32 %v1269, %v1333
    %v1382 = vsub.f32 %v1270, %v1336
    %v1383 = vsub.f32 %v1271, %v1339
    %v1384 = vsub.f32 %v1272, %v1342
    %v1385 = vsub.f32 %v1273, %v1345
    %v1386 = vsub.f32 %v1274, %v1348
    %v1387 = vsub.f32 %v1275, %v1351
    %v1388 = vsub.f32 %v1276, %v1354
    %v1389 = vsub.f32 %v1277, %v1357
    %v1390 = vsub.f32 %v1278, %v1312
    %v1391 = vsub.f32 %v1279, %v1315
    %v1392 = vsub.f32 %v1280, %v1318
    %v1393 = vsub.f32 %v1281, %v1321
    %v1394 = vsub.f32 %v1282, %v1324
    %v1395 = vsub.f32 %v1283, %v1327
    %v1396 = vsub.f32 %v1284, %v1330
    %v1397 = vsub.f32 %v1285, %v1333
    %v1398 = vsub.f32 %v1286, %v1336
    %v1399 = vsub.f32 %v1287, %v1339
    %v1400 = vsub.f32 %v1288, %v1342
    %v1401 = vsub.f32 %v1289, %v1345
    %v1402 = vsub.f32 %v1290, %v1348
    %v1403 = vsub.f32 %v1291, %v1351
    %v1404 = vsub.f32 %v1292, %v1354
    %v1405 = vsub.f32 %v1293, %v1357
    %v1406 = vsub.f32 %v1294, %v1312
    %v1407 = vsub.f32 %v1295, %v1315
    %v1408 = vsub.f32 %v1296, %v1318
    %v1409 = vsub.f32 %v1297, %v1321
    %v1410 = vsub.f32 %v1298, %v1324
    %v1411 = vsub.f32 %v1299, %v1327
    %v1412 = vsub.f32 %v1300, %v1330
    %v1413 = vsub.f32 %v1301, %v1333
    %v1414 = vsub.f32 %v1302, %v1336
    %v1415 = vsub.f32 %v1303, %v1339
    %v1416 = vsub.f32 %v1304, %v1342
    %v1417 = vsub.f32 %v1305, %v1345
    %v1418 = vsub.f32 %v1306, %v1348
    %v1419 = vsub.f32 %v1307, %v1351
    %v1420 = vsub.f32 %v1308, %v1354
    %v1421 = vsub.f32 %v1309, %v1357
    %v1422 = vmul.f32 %v1358, 1.442695
    %v1423 = vpow.pop %v1422
    %v1424 = vmul.f32 %v1359, 1.442695
    %v1425 = vpow.pop %v1424
    %v1426 = vmul.f32 %v1360, 1.442695
    %v1427 = vpow.pop %v1426
    %v1428 = vmul.f32 %v1361, 1.442695
    %v1429 = vpow.pop %v1428
    %v1430 = vmul.f32 %v1362, 1.442695
    %v1431 = vpow.pop %v1430
    %v1432 = vmul.f32 %v1363, 1.442695
    %v1433 = vpow.pop %v1432
    %v1434 = vmul.f32 %v1364, 1.442695
    %v1435 = vpow.pop %v1434
    %v1436 = vmul.f32 %v1365, 1.442695
    %v1437 = vpow.pop %v1436
    %v1438 = vmul.f32 %v1366, 1.442695
    %v1439 = vpow.pop %v1438
    %v1440 = vmul.f32 %v1367, 1.442695
    %v1441 = vpow.pop %v1440
    %v1442 = vmul.f32 %v1368, 1.442695
    %v1443 = vpow.pop %v1442
    %v1444 = vmul.f32 %v1369, 1.442695
    %v1445 = vpow.pop %v1444
    %v1446 = vmul.f32 %v1370, 1.442695
    %v1447 = vpow.pop %v1446
    %v1448 = vmul.f32 %v1371, 1.442695
    %v1449 = vpow.pop %v1448
    %v1450 = vmul.f32 %v1372, 1.442695
    %v1451 = vpow.pop %v1450
    %v1452 = vmul.f32 %v1373, 1.442695
    %v1453 = vpow.pop %v1452
    %v1454 = vmul.f32 %v1374, 1.442695
    %v1455 = vpow.pop %v1454
    %v1456 = vmul.f32 %v1375, 1.442695
    %v1457 = vpow.pop %v1456
    %v1458 = vmul.f32 %v1376, 1.442695
    %v1459 = vpow.pop %v1458
    %v1460 = vmul.f32 %v1377, 1.442695
    %v1461 = vpow.pop %v1460
    %v1462 = vmul.f32 %v1378, 1.442695
    %v1463 = vpow.pop %v1462
    %v1464 = vmul.f32 %v1379, 1.442695
    %v1465 = vpow.pop %v1464
    %v1466 = vmul.f32 %v1380, 1.442695
    %v1467 = vpow.pop %v1466
    %v1468 = vmul.f32 %v1381, 1.442695
    %v1469 = vpow.pop %v1468
    %v1470 = vmul.f32 %v1382, 1.442695
    %v1471 = vpow.pop %v1470
    %v1472 = vmul.f32 %v1383, 1.442695
    %v1473 = vpow.pop %v1472
    %v1474 = vmul.f32 %v1384, 1.442695
    %v1475 = vpow.pop %v1474
    %v1476 = vmul.f32 %v1385, 1.442695
    %v1477 = vpow.pop %v1476
    %v1478 = vmul.f32 %v1386, 1.442695
    %v1479 = vpow.pop %v1478
    %v1480 = vmul.f32 %v1387, 1.442695
    %v1481 = vpow.pop %v1480
    %v1482 = vmul.f32 %v1388, 1.442695
    %v1483 = vpow.pop %v1482
    %v1484 = vmul.f32 %v1389, 1.442695
    %v1485 = vpow.pop %v1484
    %v1486 = vmul.f32 %v1390, 1.442695
    %v1487 = vpow.pop %v1486
    %v1488 = vmul.f32 %v1391, 1.442695
    %v1489 = vpow.pop %v1488
    %v1490 = vmul.f32 %v1392, 1.442695
    %v1491 = vpow.pop %v1490
    %v1492 = vmul.f32 %v1393, 1.442695
    %v1493 = vpow.pop %v1492
    %v1494 = vmul.f32 %v1394, 1.442695
    %v1495 = vpow.pop %v1494
    %v1496 = vmul.f32 %v1395, 1.442695
    %v1497 = vpow.pop %v1496
    %v1498 = vmul.f32 %v1396, 1.442695
    %v1499 = vpow.pop %v1498
    %v1500 = vmul.f32 %v1397, 1.442695
    %v1501 = vpow.pop %v1500
    %v1502 = vmul.f32 %v1398, 1.442695
    %v1503 = vpow.pop %v1502
    %v1504 = vmul.f32 %v1399, 1.442695
    %v1505 = vpow.pop %v1504
    %v1506 = vmul.f32 %v1400, 1.442695
    %v1507 = vpow.pop %v1506
    %v1508 = vmul.f32 %v1401, 1.442695
    %v1509 = vpow.pop %v1508
    %v1510 = vmul.f32 %v1402, 1.442695
    %v1511 = vpow.pop %v1510
    %v1512 = vmul.f32 %v1403, 1.442695
    %v1513 = vpow.pop %v1512
    %v1514 = vmul.f32 %v1404, 1.442695
    %v1515 = vpow.pop %v1514
    %v1516 = vmul.f32 %v1405, 1.442695
    %v1517 = vpow.pop %v1516
    %v1518 = vmul.f32 %v1406, 1.442695
    %v1519 = vpow.pop %v1518
    %v1520 = vmul.f32 %v1407, 1.442695
    %v1521 = vpow.pop %v1520
    %v1522 = vmul.f32 %v1408, 1.442695
    %v1523 = vpow.pop %v1522
    %v1524 = vmul.f32 %v1409, 1.442695
    %v1525 = vpow.pop %v1524
    %v1526 = vmul.f32 %v1410, 1.442695
    %v1527 = vpow.pop %v1526
    %v1528 = vmul.f32 %v1411, 1.442695
    %v1529 = vpow.pop %v1528
    %v1530 = vmul.f32 %v1412, 1.442695
    %v1531 = vpow.pop %v1530
    %v1532 = vmul.f32 %v1413, 1.442695
    %v1533 = vpow.pop %v1532
    %v1534 = vmul.f32 %v1414, 1.442695
    %v1535 = vpow.pop %v1534
    %v1536 = vmul.f32 %v1415, 1.442695
    %v1537 = vpow.pop %v1536
    %v1538 = vmul.f32 %v1416, 1.442695
    %v1539 = vpow.pop %v1538
    %v1540 = vmul.f32 %v1417, 1.442695
    %v1541 = vpow.pop %v1540
    %v1542 = vmul.f32 %v1418, 1.442695
    %v1543 = vpow.pop %v1542
    %v1544 = vmul.f32 %v1419, 1.442695
    %v1545 = vpow.pop %v1544
    %v1546 = vmul.f32 %v1420, 1.442695
    %v1547 = vpow.pop %v1546
    %v1548 = vmul.f32 %v1421, 1.442695
    %v1549 = vpow.pop %v1548
    %v1550 = vadd.f32 %v1423, %v1455
    %v1551 = vadd.f32 %v1550, %v1487
    %v1552 = vadd.f32 %v1551, %v1519
    %v1553 = vadd.f32 %v1425, %v1457
    %v1554 = vadd.f32 %v1553, %v1489
    %v1555 = vadd.f32 %v1554, %v1521
    %v1556 = vadd.f32 %v1427, %v1459
    %v1557 = vadd.f32 %v1556, %v1491
    %v1558 = vadd.f32 %v1557, %v1523
    %v1559 = vadd.f32 %v1429, %v1461
    %v1560 = vadd.f32 %v1559, %v1493
    %v1561 = vadd.f32 %v1560, %v1525
    %v1562 = vadd.f32 %v1431, %v1463
    %v1563 = vadd.f32 %v1562, %v1495
    %v1564 = vadd.f32 %v1563, %v1527
    %v1565 = vadd.f32 %v1433, %v1465
    %v1566 = vadd.f32 %v1565, %v1497
    %v1567 = vadd.f32 %v1566, %v1529
    %v1568 = vadd.f32 %v1435, %v1467
    %v1569 = vadd.f32 %v1568, %v1499
    %v1570 = vadd.f32 %v1569, %v1531
    %v1571 = vadd.f32 %v1437, %v1469
    %v1572 = vadd.f32 %v1571, %v1501
    %v1573 = vadd.f32 %v1572, %v1533
    %v1574 = vadd.f32 %v1439, %v1471
    %v1575 = vadd.f32 %v1574, %v1503
    %v1576 = vadd.f32 %v1575, %v1535
    %v1577 = vadd.f32 %v1441, %v1473
    %v1578 = vadd.f32 %v1577, %v1505
    %v1579 = vadd.f32 %v1578, %v1537
    %v1580 = vadd.f32 %v1443, %v1475
    %v1581 = vadd.f32 %v1580, %v1507
    %v1582 = vadd.f32 %v1581, %v1539
    %v1583 = vadd.f32 %v1445, %v1477
    %v1584 = vadd.f32 %v1583, %v1509
    %v1585 = vadd.f32 %v1584, %v1541
    %v1586 = vadd.f32 %v1447, %v1479
    %v1587 = vadd.f32 %v1586, %v1511
    %v1588 = vadd.f32 %v1587, %v1543
    %v1589 = vadd.f32 %v1449, %v1481
    %v1590 = vadd.f32 %v1589, %v1513
    %v1591 = vadd.f32 %v1590, %v1545
    %v1592 = vadd.f32 %v1451, %v1483
    %v1593 = vadd.f32 %v1592, %v1515
    %v1594 = vadd.f32 %v1593, %v1547
    %v1595 = vadd.f32 %v1453, %v1485
    %v1596 = vadd.f32 %v1595, %v1517
    %v1597 = vadd.f32 %v1596, %v1549
    %v1598 = vrcp.pop %v1552
    %v1599 = vrcp.pop %v1555
    %v1600 = vrcp.pop %v1558
    %v1601 = vrcp.pop %v1561
    %v1602 = vrcp.pop %v1564
    %v1603 = vrcp.pop %v1567
    %v1604 = vrcp.pop %v1570
    %v1605 = vrcp.pop %v1573
    %v1606 = vrcp.pop %v1576
    %v1607 = vrcp.pop %v1579
    %v1608 = vrcp.pop %v1582
    %v1609 = vrcp.pop %v1585
    %v1610 = vrcp.pop %v1588
    %v1611 = vrcp.pop %v1591
    %v1612 = vrcp.pop %v1594
    %v1613 = vrcp.pop %v1597
    %v1614 = vmul.f32 %v1423, %v1598
    %v1615 = vmul.f32 %v1425, %v1599
    %v1616 = vmul.f32 %v1427, %v1600
    %v1617 = vmul.f32 %v1429, %v1601
    %v1618 = vmul.f32 %v1431, %v1602
    %v1619 = vmul.f32 %v1433, %v1603
    %v1620 = vmul.f32 %v1435, %v1604
    %v1621 = vmul.f32 %v1437, %v1605
    %v1622 = vmul.f32 %v1439, %v1606
    %v1623 = vmul.f32 %v1441, %v1607
    %v1624 = vmul.f32 %v1443, %v1608
    %v1625 = vmul.f32 %v1445, %v1609
    %v1626 = vmul.f32 %v1447, %v1610
    %v1627 = vmul.f32 %v1449, %v1611
    %v1628 = vmul.f32 %v1451, %v1612
    %v1629 = vmul.f32 %v1453, %v1613
    %v1630 = vmul.f32 %v1455, %v1598
    %v1631 = vmul.f32 %v1457, %v1599
    %v1632 = vmul.f32 %v1459, %v1600
    %v1633 = vmul.f32 %v1461, %v1601
    %v1634 = vmul.f32 %v1463, %v1602
    %v1635 = vmul.f32 %v1465, %v1603
    %v1636 = vmul.f32 %v1467, %v1604
    %v1637 = vmul.f32 %v1469, %v1605
    %v1638 = vmul.f32 %v1471, %v1606
    %v1639 = vmul.f32 %v1473, %v1607
    %v1640 = vmul.f32 %v1475, %v1608
    %v1641 = vmul.f32 %v1477, %v1609
    %v1642 = vmul.f32 %v1479, %v1610
    %v1643 = vmul.f32 %v1481, %v1611
    %v1644 = vmul.f32 %v1483, %v1612
    %v1645 = vmul.f32 %v1485, %v1613
    %v1646 = vmul.f32 %v1487, %v1598
    %v1647 = vmul.f32 %v1489, %v1599
    %v1648 = vmul.f32 %v1491, %v1600
    %v1649 = vmul.f32 %v1493, %v1601
    %v1650 = vmul.f32 %v1495, %v1602
    %v1651 = vmul.f32 %v1497, %v1603
    %v1652 = vmul.f32 %v1499, %v1604
    %v1653 = vmul.f32 %v1501, %v1605
    %v1654 = vmul.f32 %v1503, %v1606
    %v1655 = vmul.f32 %v1505, %v1607
    %v1656 = vmul.f32 %v1507, %v1608
    %v1657 = vmul.f32 %v1509, %v1609
    %v1658 = vmul.f32 %v1511, %v1610
    %v1659 = vmul.f32 %v1513, %v1611
    %v1660 = vmul.f32 %v1515, %v1612
    %v1661 = vmul.f32 %v1517, %v1613
    %v1662 = vmul.f32 %v1519, %v1598
    %v1663 = vmul.f32 %v1521, %v1599
    %v1664 = vmul.f32 %v1523, %v1600
    %v1665 = vmul.f32 %v1525, %v1601
    %v1666 = vmul.f32 %v1527, %v1602
    %v1667 = vmul.f32 %v1529, %v1603
    %v1668 = vmul.f32 %v1531, %v1604
    %v1669 = vmul.f32 %v1533, %v1605
    %v1670 = vmul.f32 %v1535, %v1606
    %v1671 = vmul.f32 %v1537, %v1607
    %v1672 = vmul.f32 %v1539, %v1608
    %v1673 = vmul.f32 %v1541, %v1609
    %v1674 = vmul.f32 %v1543, %v1610
    %v1675 = vmul.f32 %v1545, %v1611
    %v1676 = vmul.f32 %v1547, %v1612
    %v1677 = vmul.f32 %v1549, %v1613
    %v1678 = vmul.f32 %v1614, %v591
    %v1679 = vmul.f32 %v1615, %v596
    %v1680 = vmul.f32 %v1616, %v601
    %v1681 = vmul.f32 %v1617, %v606
    %v1682 = vmul.f32 %v1618, %v611
    %v1683 = vmul.f32 %v1619, %v616
    %v1684 = vmul.f32 %v1620, %v621
    %v1685 = vmul.f32 %v1621, %v626
    %v1686 = vmul.f32 %v1622, %v631
    %v1687 = vmul.f32 %v1623, %v636
    %v1688 = vmul.f32 %v1624, %v641
    %v1689 = vmul.f32 %v1625, %v646
    %v1690 = vmul.f32 %v1626, %v651
    %v1691 = vmul.f32 %v1627, %v656
    %v1692 = vmul.f32 %v1628, %v661
    %v1693 = vmul.f32 %v1629, %v666
    %v1694 = vmul.f32 %v1630, %v671
    %v1695 = vmul.f32 %v1631, %v676
    %v1696 = vmul.f32 %v1632, %v681
    %v1697 = vmul.f32 %v1633, %v686
    %v1698 = vmul.f32 %v1634, %v691
    %v1699 = vmul.f32 %v1635, %v696
    %v1700 = vmul.f32 %v1636, %v701
    %v1701 = vmul.f32 %v1637, %v706
    %v1702 = vmul.f32 %v1638, %v711
    %v1703 = vmul.f32 %v1639, %v716
    %v1704 = vmul.f32 %v1640, %v721
    %v1705 = vmul.f32 %v1641, %v726
    %v1706 = vmul.f32 %v1642, %v731
    %v1707 = vmul.f32 %v1643, %v736
    %v1708 = vmul.f32 %v1644, %v741
    %v1709 = vmul.f32 %v1645, %v746
    %v1710 = vmul.f32 %v1646, %v751
    %v1711 = vmul.f32 %v1647, %v756
    %v1712 = vmul.f32 %v1648, %v761
    %v1713 = vmul.f32 %v1649, %v766
    %v1714 = vmul.f32 %v1650, %v771
    %v1715 = vmul.f32 %v1651, %v776
    %v1716 = vmul.f32 %v1652, %v781
    %v1717 = vmul.f32 %v1653, %v786
    %v1718 = vmul.f32 %v1654, %v791
    %v1719 = vmul.f32 %v1655, %v796
    %v1720 = vmul.f32 %v1656, %v801
    %v1721 = vmul.f32 %v1657, %v806
    %v1722 = vmul.f32 %v1658, %v811
    %v1723 = vmul.f32 %v1659, %v816
    %v1724 = vmul.f32 %v1660, %v821
    %v1725 = vmul.f32 %v1661, %v826
    %v1726 = vmul.f32 %v1662, %v831
    %v1727 = vmul.f32 %v1663, %v836
    %v1728 = vmul.f32 %v1664, %v841
    %v1729 = vmul.f32 %v1665, %v846
    %v1730 = vmul.f32 %v1666, %v851
    %v1731 = vmul.f32 %v1667, %v856
    %v1732 = vmul.f32 %v1668, %v861
    %v1733 = vmul.f32 %v1669, %v866
    %v1734 = vmul.f32 %v1670, %v871
    %v1735 = vmul.f32 %v1671, %v876
    %v1736 = vmul.f32 %v1672, %v881
    %v1737 = vmul.f32 %v1673, %v886
    %v1738 = vmul.f32 %v1674, %v891
    %v1739 = vmul.f32 %v1675, %v896
    %v1740 = vmul.f32 %v1676, %v901
    %v1741 = vmul.f32 %v1677, %v906
    %vm1742 = vcmask 523520
    %v1743 = vsel %vm1742, %v1678, 0.0
    %v1744 = vsel %vm1742, %v1694, 0.0
    %v1745 = vadd.f32 %v1743, %v1744
    %v1746 = vsel %vm1742, %v1710, 0.0
    %v1747 = vadd.f32 %v1745, %v1746
    %v1748 = vsel %vm1742, %v1726, 0.0
    %v1749 = vadd.f32 %v1747, %v1748
    %v1750 = vsel %vm1742, %v1679, 0.0
    %v1751 = vsel %vm1742, %v1695, 0.0
    %v1752 = vadd.f32 %v1750, %v1751
    %v1753 = vsel %vm1742, %v1711, 0.0
    %v1754 = vadd.f32 %v1752, %v1753
    %v1755 = vsel %vm1742, %v1727, 0.0
    %v1756 = vadd.f32 %v1754, %v1755
    %v1757 = vsel %vm1742, %v1680, 0.0
    %v1758 = vsel %vm1742, %v1696, 0.0
    %v1759 = vadd.f32 %v1757, %v1758
    %v1760 = vsel %vm1742, %v1712, 0.0
    %v1761 = vadd.f32 %v1759, %v1760
    %v1762 = vsel %vm1742, %v1728, 0.0
    %v1763 = vadd.f32 %v1761, %v1762
    %v1764 = vsel %vm1742, %v1681, 0.0
    %v1765 = vsel %vm1742, %v1697, 0.0
    %v1766 = vadd.f32 %v1764, %v1765
    %v1767 = vsel %vm1742, %v1713, 0.0
    %v1768 = vadd.f32 %v1766, %v1767
    %v1769 = vsel %vm1742, %v1729, 0.0
    %v1770 = vadd.f32 %v1768, %v1769
    %v1771 = vsel %vm1742, %v1682, 0.0
    %v1772 = vsel %vm1742, %v1698, 0.0
    %v1773 = vadd.f32 %v1771, %v1772
    %v1774 = vsel %vm1742, %v1714, 0.0
    %v1775 = vadd.f32 %v1773, %v1774
    %v1776 = vsel %vm1742, %v1730, 0.0
    %v1777 = vadd.f32 %v1775, %v1776
    %v1778 = vsel %vm1742, %v1683, 0.0
    %v1779 = vsel %vm1742, %v1699, 0.0
    %v1780 = vadd.f32 %v1778, %v1779
    %v1781 = vsel %vm1742, %v1715, 0.0
    %v1782 = vadd.f32 %v1780, %v1781
    %v1783 = vsel %vm1742, %v1731, 0.0
    %v1784 = vadd.f32 %v1782, %v1783
    %v1785 = vsel %vm1742, %v1684, 0.0
    %v1786 = vsel %vm1742, %v1700, 0.0
    %v1787 = vadd.f32 %v1785, %v1786
    %v1788 = vsel %vm1742, %v1716, 0.0
    %v1789 = vadd.f32 %v1787, %v1788
    %v1790 = vsel %vm1742, %v1732, 0.0
    %v1791 = vadd.f32 %v1789, %v1790
    %v1792 = vsel %vm1742, %v1685, 0.0
    %v1793 = vsel %vm1742, %v1701, 0.0
    %v1794 = vadd.f32 %v1792, %v1793
    %v1795 = vsel %vm1742, %v1717, 0.0
    %v1796 = vadd.f32 %v1794, %v1795
    %v1797 = vsel %vm1742, %v1733, 0.0
    %v1798 = vadd.f32 %v1796, %v1797
    %v1799 = vsel %vm1742, %v1686, 0.0
    %v1800 = vsel %vm1742, %v1702, 0.0
    %v1801 = vadd.f32 %v1799, %v1800
    %v1802 = vsel %vm1742, %v1718, 0.0
    %v1803 = vadd.f32 %v1801, %v1802
    %v1804 = vsel %vm1742, %v1734, 0.0
    %v1805 = vadd.f32 %v1803, %v1804
    %v1806 = vsel %vm1742, %v1687, 0.0
    %v1807 = vsel %vm1742, %v1703, 0.0
    %v1808 = vadd.f32 %v1806, %v1807
    %v1809 = vsel %vm1742, %v1719, 0.0
    %v1810 = vadd.f32 %v1808, %v1809
    %v1811 = vsel %vm1742, %v1735, 0.0
    %v1812 = vadd.f32 %v1810, %v1811
    %v1813 = vsel %vm1742, %v1688, 0.0
    %v1814 = vsel %vm1742, %v1704, 0.0
    %v1815 = vadd.f32 %v1813, %v1814
    %v1816 = vsel %vm1742, %v1720, 0.0
    %v1817 = vadd.f32 %v1815, %v1816
    %v1818 = vsel %vm1742, %v1736, 0.0
    %v1819 = vadd.f32 %v1817, %v1818
    %v1820 = vsel %vm1742, %v1689, 0.0
    %v1821 = vsel %vm1742, %v1705, 0.0
    %v1822 = vadd.f32 %v1820, %v1821
    %v1823 = vsel %vm1742, %v1721, 0.0
    %v1824 = vadd.f32 %v1822, %v1823
    %v1825 = vsel %vm1742, %v1737, 0.0
    %v1826 = vadd.f32 %v1824, %v1825
    %v1827 = vsel %vm1742, %v1690, 0.0
    %v1828 = vsel %vm1742, %v1706, 0.0
    %v1829 = vadd.f32 %v1827, %v1828
    %v1830 = vsel %vm1742, %v1722, 0.0
    %v1831 = vadd.f32 %v1829, %v1830
    %v1832 = vsel %vm1742, %v1738, 0.0
    %v1833 = vadd.f32 %v1831, %v1832
    %v1834 = vsel %vm1742, %v1691, 0.0
    %v1835 = vsel %vm1742, %v1707, 0.0
    %v1836 = vadd.f32 %v1834, %v1835
    %v1837 = vsel %vm1742, %v1723, 0.0
    %v1838 = vadd.f32 %v1836, %v1837
    %v1839 = vsel %vm1742, %v1739, 0.0
    %v1840 = vadd.f32 %v1838, %v1839
    %v1841 = vsel %vm1742, %v1692, 0.0
    %v1842 = vsel %vm1742, %v1708, 0.0
    %v1843 = vadd.f32 %v1841, %v1842
    %v1844 = vsel %vm1742, %v1724, 0.0
    %v1845 = vadd.f32 %v1843, %v1844
    %v1846 = vsel %vm1742, %v1740, 0.0
    %v1847 = vadd.f32 %v1845, %v1846
    %v1848 = vsel %vm1742, %v1693, 0.0
    %v1849 = vsel %vm1742, %v1709, 0.0
    %v1850 = vadd.f32 %v1848, %v1849
    %v1851 = vsel %vm1742, %v1725, 0.0
    %v1852 = vadd.f32 %v1850, %v1851
    %v1853 = vsel %vm1742, %v1741, 0.0
    %v1854 = vadd.f32 %v1852, %v1853
    %v1855 = vld [vmem:[%s6] sm:$0xff]
    %v1856 = vld [vmem:[%s6 + $0x8] sm:$0xff]
    %v1857 = vld [vmem:[%s6 + $0x10] sm:$0xff]
    %v1858 = vld [vmem:[%s6 + $0x18] sm:$0xff]
    %v1859 = vld [vmem:[%s7] sm:$0xff]
    %v1860 = vld [vmem:[%s7 + $0x8] sm:$0xff]
    %v1861 = vld [vmem:[%s7 + $0x10] sm:$0xff]
    %v1862 = vld [vmem:[%s7 + $0x18] sm:$0xff]
    %v1863 = vld [vmem:[%s7 + $0x20] sm:$0xff]
    %v1864 = vld [vmem:[%s7 + $0x28] sm:$0xff]
    %1865 = vmatprep.subr.mxu0 0.0
    %1866 = vmatpush1.msra.mxu0 0.0
    %1867 = vmatprep.subr.mxu0 0.0
    %1868 = vmatpush1.msra.mxu0 0.0
    %1869 = vmatprep.subr.mxu0 0.0
    %1870 = vmatpush1.msra.mxu0 0.0
    %1871 = vmatprep.subr.mxu0 0.0
    %1872 = vmatpush1.msra.mxu0 0.0
    %1873 = vmatprep.subr.mxu0 0.0
    %1874 = vmatpush1.msra.mxu0 0.0
    %1875 = vmatprep.subr.mxu0 0.0
    %1876 = vmatpush1.msra.mxu0 0.0
    %1877 = vmatprep.subr.mxu0 0.0
    %1878 = vmatpush1.msra.mxu0 0.0
    %1879 = vmatprep.subr.mxu0 0.0
    %1880 = vmatpush1.msra.mxu0 0.0
    %1881 = vmatprep.subr.mxu0 0.0
    %1882 = vmatpush1.msra.mxu0 0.0
    %1883 = vmatprep.subr.mxu0 0.0
    %1884 = vmatpush1.msra.mxu0 0.0
    %1885 = vmatprep.subr.mxu0 0.0
    %1886 = vmatpush1.msra.mxu0 %v1864
    %1887 = vmatprep.subr.mxu0 0.0
    %1888 = vmatpush1.msra.mxu0 %v1863
    %1889 = vmatprep.subr.mxu0 0.0
    %1890 = vmatpush1.msra.mxu0 %v1862
    %1891 = vmatprep.subr.mxu0 0.0
    %1892 = vmatpush1.msra.mxu0 %v1861
    %1893 = vmatprep.subr.mxu0 0.0
    %1894 = vmatpush1.msra.mxu0 %v1860
    %1895 = vmatprep.subr.mxu0 0.0
    %1896 = vmatpush1.msra.mxu0 %v1859
    %1897 = vmatprep.subr.mxu0 0.0
    %1898 = vmatpush2.msra.mxu0 0.0
    %1899 = vmatprep.subr.mxu0 0.0
    %1900 = vmatpush2.msra.mxu0 0.0
    %1901 = vmatprep.subr.mxu0 0.0
    %1902 = vmatpush2.msra.mxu0 0.0
    %1903 = vmatprep.subr.mxu0 0.0
    %1904 = vmatpush2.msra.mxu0 0.0
    %1905 = vmatprep.subr.mxu0 0.0
    %1906 = vmatpush2.msra.mxu0 0.0
    %1907 = vmatprep.subr.mxu0 0.0
    %1908 = vmatpush2.msra.mxu0 0.0
    %1909 = vmatprep.subr.mxu0 0.0
    %1910 = vmatpush2.msra.mxu0 0.0
    %1911 = vmatprep.subr.mxu0 0.0
    %1912 = vmatpush2.msra.mxu0 0.0
    %1913 = vmatprep.subr.mxu0 0.0
    %1914 = vmatpush2.msra.mxu0 0.0
    %1915 = vmatprep.subr.mxu0 0.0
    %1916 = vmatpush2.msra.mxu0 0.0
    %1917 = vmatprep.subr.mxu0 0.0
    %1918 = vmatpush2.msra.mxu0 0.0
    %1919 = vmatprep.subr.mxu0 0.0
    %1920 = vmatpush2.msra.mxu0 0.0
    %1921 = vmatprep.subr.mxu0 0.0
    %1922 = vmatpush2.msra.mxu0 0.0
    %1923 = vmatprep.subr.mxu0 0.0
    %1924 = vmatpush2.msra.mxu0 0.0
    %1925 = vmatprep.subr.mxu0 0.0
    %1926 = vmatpush2.msra.mxu0 0.0
    %1927 = vmatprep.subr.mxu0 0.0
    %1928 = vmatpush2.msra.mxu0 0.0
    %1929 = vmatprep.mubr.f32.mxu0 0.0
    %1930 = vmatmul.mubr.f32.gmra.mxu0 %v64
    %v1931 = vpop.f32.mrf.mxu0
    %v1932 = vadd.f32 0.0, %v1931
    %v1933 = vpop.f32.mrf.mxu0
    %1934 = vmatprep.mubr.f32.mxu0 0.0
    %1935 = vmatmul.mubr.f32.gmra.mxu0 %v67
    %v1936 = vpop.f32.mrf.mxu0
    %v1937 = vadd.f32 0.0, %v1936
    %v1938 = vpop.f32.mrf.mxu0
    %1939 = vmatprep.mubr.f32.mxu0 0.0
    %1940 = vmatmul.mubr.f32.gmra.mxu0 %v70
    %v1941 = vpop.f32.mrf.mxu0
    %v1942 = vadd.f32 0.0, %v1941
    %v1943 = vpop.f32.mrf.mxu0
    %1944 = vmatprep.mubr.f32.mxu0 0.0
    %1945 = vmatmul.mubr.f32.gmra.mxu0 %v73
    %v1946 = vpop.f32.mrf.mxu0
    %v1947 = vadd.f32 0.0, %v1946
    %v1948 = vpop.f32.mrf.mxu0
    %1949 = vmatprep.mubr.f32.mxu0 0.0
    %1950 = vmatmul.mubr.f32.gmra.mxu0 %v76
    %v1951 = vpop.f32.mrf.mxu0
    %v1952 = vadd.f32 0.0, %v1951
    %v1953 = vpop.f32.mrf.mxu0
    %1954 = vmatprep.mubr.f32.mxu0 0.0
    %1955 = vmatmul.mubr.f32.gmra.mxu0 %v79
    %v1956 = vpop.f32.mrf.mxu0
    %v1957 = vadd.f32 0.0, %v1956
    %v1958 = vpop.f32.mrf.mxu0
    %1959 = vmatprep.mubr.f32.mxu0 0.0
    %1960 = vmatmul.mubr.f32.gmra.mxu0 %v82
    %v1961 = vpop.f32.mrf.mxu0
    %v1962 = vadd.f32 0.0, %v1961
    %v1963 = vpop.f32.mrf.mxu0
    %1964 = vmatprep.mubr.f32.mxu0 0.0
    %1965 = vmatmul.mubr.f32.gmra.mxu0 %v85
    %v1966 = vpop.f32.mrf.mxu0
    %v1967 = vadd.f32 0.0, %v1966
    %v1968 = vpop.f32.mrf.mxu0
    %1969 = vmatprep.mubr.f32.mxu0 0.0
    %1970 = vmatmul.mubr.f32.gmra.mxu0 %v88
    %v1971 = vpop.f32.mrf.mxu0
    %v1972 = vadd.f32 0.0, %v1971
    %v1973 = vpop.f32.mrf.mxu0
    %1974 = vmatprep.mubr.f32.mxu0 0.0
    %1975 = vmatmul.mubr.f32.gmra.mxu0 %v91
    %v1976 = vpop.f32.mrf.mxu0
    %v1977 = vadd.f32 0.0, %v1976
    %v1978 = vpop.f32.mrf.mxu0
    %1979 = vmatprep.mubr.f32.mxu0 0.0
    %1980 = vmatmul.mubr.f32.gmra.mxu0 %v94
    %v1981 = vpop.f32.mrf.mxu0
    %v1982 = vadd.f32 0.0, %v1981
    %v1983 = vpop.f32.mrf.mxu0
    %1984 = vmatprep.mubr.f32.mxu0 0.0
    %1985 = vmatmul.mubr.f32.gmra.mxu0 %v97
    %v1986 = vpop.f32.mrf.mxu0
    %v1987 = vadd.f32 0.0, %v1986
    %v1988 = vpop.f32.mrf.mxu0
    %1989 = vmatprep.mubr.f32.mxu0 0.0
    %1990 = vmatmul.mubr.f32.gmra.mxu0 %v100
    %v1991 = vpop.f32.mrf.mxu0
    %v1992 = vadd.f32 0.0, %v1991
    %v1993 = vpop.f32.mrf.mxu0
    %1994 = vmatprep.mubr.f32.mxu0 0.0
    %1995 = vmatmul.mubr.f32.gmra.mxu0 %v103
    %v1996 = vpop.f32.mrf.mxu0
    %v1997 = vadd.f32 0.0, %v1996
    %v1998 = vpop.f32.mrf.mxu0
    %1999 = vmatprep.mubr.f32.mxu0 0.0
    %2000 = vmatmul.mubr.f32.gmra.mxu0 %v106
    %v2001 = vpop.f32.mrf.mxu0
    %v2002 = vadd.f32 0.0, %v2001
    %v2003 = vpop.f32.mrf.mxu0
    %2004 = vmatprep.mubr.f32.mxu0 0.0
    %2005 = vmatmul.mubr.f32.gmra.mxu0 %v109
    %v2006 = vpop.f32.mrf.mxu0
    %v2007 = vadd.f32 0.0, %v2006
    %v2008 = vpop.f32.mrf.mxu0
    %2009 = vdwg.mxu0
    %2026 = vrot.lane.b32.xlu0 %v1749, 96
    %v2027 = vpop.permute.xlu0 %2026
    %2028 = vrot.lane.b32.xlu0 %v1756, 96
    %v2029 = vpop.permute.xlu0 %2028
    %2030 = vrot.lane.b32.xlu0 %v1763, 96
    %v2031 = vpop.permute.xlu0 %2030
    %2032 = vrot.lane.b32.xlu0 %v1770, 96
    %v2033 = vpop.permute.xlu0 %2032
    %2034 = vrot.lane.b32.xlu0 %v1777, 96
    %v2035 = vpop.permute.xlu0 %2034
    %2036 = vrot.lane.b32.xlu0 %v1784, 96
    %v2037 = vpop.permute.xlu0 %2036
    %2038 = vrot.lane.b32.xlu0 %v1791, 96
    %v2039 = vpop.permute.xlu0 %2038
    %2040 = vrot.lane.b32.xlu0 %v1798, 96
    %v2041 = vpop.permute.xlu0 %2040
    %2042 = vrot.lane.b32.xlu0 %v1805, 96
    %v2043 = vpop.permute.xlu0 %2042
    %2044 = vrot.lane.b32.xlu0 %v1812, 96
    %v2045 = vpop.permute.xlu0 %2044
    %2046 = vrot.lane.b32.xlu0 %v1819, 96
    %v2047 = vpop.permute.xlu0 %2046
    %2048 = vrot.lane.b32.xlu0 %v1826, 96
    %v2049 = vpop.permute.xlu0 %2048
    %2050 = vrot.lane.b32.xlu0 %v1833, 96
    %v2051 = vpop.permute.xlu0 %2050
    %2052 = vrot.lane.b32.xlu0 %v1840, 96
    %v2053 = vpop.permute.xlu0 %2052
    %2054 = vrot.lane.b32.xlu0 %v1847, 96
    %v2055 = vpop.permute.xlu0 %2054
    %2056 = vrot.lane.b32.xlu0 %v1854, 96
    %v2057 = vpop.permute.xlu0 %2056
    %v2058 = vsel %vm331, %v2027, 0
    %v2060 = vsel %vm331, %v2029, 0
    %v2062 = vsel %vm331, %v2031, 0
    %v2064 = vsel %vm331, %v2033, 0
    %v2066 = vsel %vm331, %v2035, 0
    %v2068 = vsel %vm331, %v2037, 0
    %v2070 = vsel %vm331, %v2039, 0
    %v2072 = vsel %vm331, %v2041, 0
    %v2074 = vsel %vm331, %v2043, 0
    %v2076 = vsel %vm331, %v2045, 0
    %v2078 = vsel %vm331, %v2047, 0
    %v2080 = vsel %vm331, %v2049, 0
    %v2082 = vsel %vm331, %v2051, 0
    %v2084 = vsel %vm331, %v2053, 0
    %v2086 = vsel %vm331, %v2055, 0
    %v2088 = vsel %vm331, %v2057, 0
    %2090 = vmatprep.subr.mxu0 0.0
    %2091 = vmatpush1.msra.mxu0 0.0
    %2092 = vmatprep.subr.mxu0 0.0
    %2093 = vmatpush1.msra.mxu0 0.0
    %2094 = vmatprep.subr.mxu0 0.0
    %2095 = vmatpush1.msra.mxu0 0.0
    %2096 = vmatprep.subr.mxu0 0.0
    %2097 = vmatpush1.msra.mxu0 0.0
    %2098 = vmatprep.subr.mxu0 0.0
    %2099 = vmatpush1.msra.mxu0 0.0
    %2100 = vmatprep.subr.mxu0 0.0
    %2101 = vmatpush1.msra.mxu0 0.0
    %2102 = vmatprep.subr.mxu0 0.0
    %2103 = vmatpush1.msra.mxu0 0.0
    %2104 = vmatprep.subr.mxu0 0.0
    %2105 = vmatpush1.msra.mxu0 0.0
    %2106 = vmatprep.subr.mxu0 0.0
    %2107 = vmatpush1.msra.mxu0 0.0
    %2108 = vmatprep.subr.mxu0 0.0
    %2109 = vmatpush1.msra.mxu0 0.0
    %2110 = vmatprep.subr.mxu0 0.0
    %2111 = vmatpush1.msra.mxu0 0.0
    %2112 = vmatprep.subr.mxu0 0.0
    %2113 = vmatpush1.msra.mxu0 0.0
    %2114 = vmatprep.subr.mxu0 0.0
    %2115 = vmatpush1.msra.mxu0 %v1858
    %2116 = vmatprep.subr.mxu0 0.0
    %2117 = vmatpush1.msra.mxu0 %v1857
    %2118 = vmatprep.subr.mxu0 0.0
    %2119 = vmatpush1.msra.mxu0 %v1856
    %2120 = vmatprep.subr.mxu0 0.0
    %2121 = vmatpush1.msra.mxu0 %v1855
    %2122 = vmatprep.subr.mxu0 0.0
    %2123 = vmatpush2.msra.mxu0 0.0
    %2124 = vmatprep.subr.mxu0 0.0
    %2125 = vmatpush2.msra.mxu0 0.0
    %2126 = vmatprep.subr.mxu0 0.0
    %2127 = vmatpush2.msra.mxu0 0.0
    %2128 = vmatprep.subr.mxu0 0.0
    %2129 = vmatpush2.msra.mxu0 0.0
    %2130 = vmatprep.subr.mxu0 0.0
    %2131 = vmatpush2.msra.mxu0 0.0
    %2132 = vmatprep.subr.mxu0 0.0
    %2133 = vmatpush2.msra.mxu0 0.0
    %2134 = vmatprep.subr.mxu0 0.0
    %2135 = vmatpush2.msra.mxu0 0.0
    %2136 = vmatprep.subr.mxu0 0.0
    %2137 = vmatpush2.msra.mxu0 0.0
    %2138 = vmatprep.subr.mxu0 0.0
    %2139 = vmatpush2.msra.mxu0 0.0
    %2140 = vmatprep.subr.mxu0 0.0
    %2141 = vmatpush2.msra.mxu0 0.0
    %2142 = vmatprep.subr.mxu0 0.0
    %2143 = vmatpush2.msra.mxu0 0.0
    %2144 = vmatprep.subr.mxu0 0.0
    %2145 = vmatpush2.msra.mxu0 0.0
    %2146 = vmatprep.subr.mxu0 0.0
    %2147 = vmatpush2.msra.mxu0 0.0
    %2148 = vmatprep.subr.mxu0 0.0
    %2149 = vmatpush2.msra.mxu0 0.0
    %2150 = vmatprep.subr.mxu0 0.0
    %2151 = vmatpush2.msra.mxu0 0.0
    %2152 = vmatprep.subr.mxu0 0.0
    %2153 = vmatpush2.msra.mxu0 0.0
    %2154 = vmatprep.mubr.f32.mxu0 0.0
    %2155 = vmatmul.mubr.f32.gmra.mxu0 %v2058
    %v2156 = vpop.f32.mrf.mxu0
    %v2157 = vadd.f32 %v1932, %v2156
    %v2158 = vpop.f32.mrf.mxu0
    %2159 = vmatprep.mubr.f32.mxu0 0.0
    %2160 = vmatmul.mubr.f32.gmra.mxu0 %v2060
    %v2161 = vpop.f32.mrf.mxu0
    %v2162 = vadd.f32 %v1937, %v2161
    %v2163 = vpop.f32.mrf.mxu0
    %2164 = vmatprep.mubr.f32.mxu0 0.0
    %2165 = vmatmul.mubr.f32.gmra.mxu0 %v2062
    %v2166 = vpop.f32.mrf.mxu0
    %v2167 = vadd.f32 %v1942, %v2166
    %v2168 = vpop.f32.mrf.mxu0
    %2169 = vmatprep.mubr.f32.mxu0 0.0
    %2170 = vmatmul.mubr.f32.gmra.mxu0 %v2064
    %v2171 = vpop.f32.mrf.mxu0
    %v2172 = vadd.f32 %v1947, %v2171
    %v2173 = vpop.f32.mrf.mxu0
    %2174 = vmatprep.mubr.f32.mxu0 0.0
    %2175 = vmatmul.mubr.f32.gmra.mxu0 %v2066
    %v2176 = vpop.f32.mrf.mxu0
    %v2177 = vadd.f32 %v1952, %v2176
    %v2178 = vpop.f32.mrf.mxu0
    %2179 = vmatprep.mubr.f32.mxu0 0.0
    %2180 = vmatmul.mubr.f32.gmra.mxu0 %v2068
    %v2181 = vpop.f32.mrf.mxu0
    %v2182 = vadd.f32 %v1957, %v2181
    %v2183 = vpop.f32.mrf.mxu0
    %2184 = vmatprep.mubr.f32.mxu0 0.0
    %2185 = vmatmul.mubr.f32.gmra.mxu0 %v2070
    %v2186 = vpop.f32.mrf.mxu0
    %v2187 = vadd.f32 %v1962, %v2186
    %v2188 = vpop.f32.mrf.mxu0
    %2189 = vmatprep.mubr.f32.mxu0 0.0
    %2190 = vmatmul.mubr.f32.gmra.mxu0 %v2072
    %v2191 = vpop.f32.mrf.mxu0
    %v2192 = vadd.f32 %v1967, %v2191
    %v2193 = vpop.f32.mrf.mxu0
    %2194 = vmatprep.mubr.f32.mxu0 0.0
    %2195 = vmatmul.mubr.f32.gmra.mxu0 %v2074
    %v2196 = vpop.f32.mrf.mxu0
    %v2197 = vadd.f32 %v1972, %v2196
    %v2198 = vpop.f32.mrf.mxu0
    %2199 = vmatprep.mubr.f32.mxu0 0.0
    %2200 = vmatmul.mubr.f32.gmra.mxu0 %v2076
    %v2201 = vpop.f32.mrf.mxu0
    %v2202 = vadd.f32 %v1977, %v2201
    %v2203 = vpop.f32.mrf.mxu0
    %2204 = vmatprep.mubr.f32.mxu0 0.0
    %2205 = vmatmul.mubr.f32.gmra.mxu0 %v2078
    %v2206 = vpop.f32.mrf.mxu0
    %v2207 = vadd.f32 %v1982, %v2206
    %v2208 = vpop.f32.mrf.mxu0
    %2209 = vmatprep.mubr.f32.mxu0 0.0
    %2210 = vmatmul.mubr.f32.gmra.mxu0 %v2080
    %v2211 = vpop.f32.mrf.mxu0
    %v2212 = vadd.f32 %v1987, %v2211
    %v2213 = vpop.f32.mrf.mxu0
    %2214 = vmatprep.mubr.f32.mxu0 0.0
    %2215 = vmatmul.mubr.f32.gmra.mxu0 %v2082
    %v2216 = vpop.f32.mrf.mxu0
    %v2217 = vadd.f32 %v1992, %v2216
    %v2218 = vpop.f32.mrf.mxu0
    %2219 = vmatprep.mubr.f32.mxu0 0.0
    %2220 = vmatmul.mubr.f32.gmra.mxu0 %v2084
    %v2221 = vpop.f32.mrf.mxu0
    %v2222 = vadd.f32 %v1997, %v2221
    %v2223 = vpop.f32.mrf.mxu0
    %2224 = vmatprep.mubr.f32.mxu0 0.0
    %2225 = vmatmul.mubr.f32.gmra.mxu0 %v2086
    %v2226 = vpop.f32.mrf.mxu0
    %v2227 = vadd.f32 %v2002, %v2226
    %v2228 = vpop.f32.mrf.mxu0
    %2229 = vmatprep.mubr.f32.mxu0 0.0
    %2230 = vmatmul.mubr.f32.gmra.mxu0 %v2088
    %v2231 = vpop.f32.mrf.mxu0
    %v2232 = vadd.f32 %v2007, %v2231
    %v2233 = vpop.f32.mrf.mxu0
    %2234 = vdwg.mxu0
    %v2235 = vld [vmem:[%s8] sm:$0x1]
    %v2237 = vlaneseq
    %v2238 = vshrl.u32 %v2237, 7
    %v2239 = vsub.s32 0, %v2238
    %v2240 = vrot.slane %v2235, %v2239
    %v2242 = vadd.f32 %v2157, %v2240
    %v2243 = vadd.f32 %v2162, %v2240
    %v2244 = vadd.f32 %v2167, %v2240
    %v2245 = vadd.f32 %v2172, %v2240
    %v2246 = vadd.f32 %v2177, %v2240
    %v2247 = vadd.f32 %v2182, %v2240
    %v2248 = vadd.f32 %v2187, %v2240
    %v2249 = vadd.f32 %v2192, %v2240
    %v2250 = vadd.f32 %v2197, %v2240
    %v2251 = vadd.f32 %v2202, %v2240
    %v2252 = vadd.f32 %v2207, %v2240
    %v2253 = vadd.f32 %v2212, %v2240
    %v2254 = vadd.f32 %v2217, %v2240
    %v2255 = vadd.f32 %v2222, %v2240
    %v2256 = vadd.f32 %v2227, %v2240
    %v2257 = vadd.f32 %v2232, %v2240
    %2258 = vxpose.xlu0.b32.start [1/16] %v2242, 128
    %2259 = vxpose.xlu0.b32.cont [2/16] %v2243, 128
    %2260 = vxpose.xlu0.b32.cont [3/16] %v2244, 128
    %2261 = vxpose.xlu0.b32.cont [4/16] %v2245, 128
    %2262 = vxpose.xlu0.b32.cont [5/16] %v2246, 128
    %2263 = vxpose.xlu0.b32.cont [6/16] %v2247, 128
    %2264 = vxpose.xlu0.b32.cont [7/16] %v2248, 128
    %2265 = vxpose.xlu0.b32.cont [8/16] %v2249, 128
    %2266 = vxpose.xlu0.b32.cont [9/16] %v2250, 128
    %2267 = vxpose.xlu0.b32.cont [10/16] %v2251, 128
    %2268 = vxpose.xlu0.b32.cont [11/16] %v2252, 128
    %2269 = vxpose.xlu0.b32.cont [12/16] %v2253, 128
    %2270 = vxpose.xlu0.b32.cont [13/16] %v2254, 128
    %2271 = vxpose.xlu0.b32.cont [14/16] %v2255, 128
    %2272 = vxpose.xlu0.b32.cont [15/16] %v2256, 128
    %2273 = vxpose.xlu0.b32.end [16/16] %v2257, 128
    %v2274 = vpop.trf.xlu0
    %v2275 = vpop.trf.xlu0
    %v2276 = vpop.trf.xlu0
    %v2277 = vpop.trf.xlu0
    %v2278 = vpop.trf.xlu0
    %v2279 = vpop.trf.xlu0
    %v2280 = vpop.trf.xlu0
    %v2281 = vpop.trf.xlu0
    %v2282 = vpop.trf.xlu0
    %v2283 = vpop.trf.xlu0
    %v2284 = vpop.trf.xlu0
    %v2285 = vpop.trf.xlu0
    %v2286 = vpop.trf.xlu0
    %v2287 = vpop.trf.xlu0
    %v2288 = vpop.trf.xlu0
    %v2289 = vpop.trf.xlu0
    %2290 = vst [vmem:[#allocation2] sm:$0xff] %v2274
    %2291 = vst [vmem:[#allocation2 + $0x8] sm:$0xff] %v2275
    // Predicated region
    $region38: #{tpu_custom_call.1} parent=1 // pred_check
      _
    $region39: #{tpu_custom_call.1} parent=1 // pred_check_branch
      %2293 = sbr.rel (0) target = $region41
    $region40: #{tpu_custom_call.1} parent=1 // pred_region
      %s2295 = ssub.s32 256, 256
      %2296 = vsyncadd [#allocation3], %s2295
      %s2297 = sshll.u32 [#allocation2], 4
      %s2298 = int_to_ptr.vmem [resolvable:$true] %s2297
      %2303 = dma.vmem_to_hbm [thread:$0]  %s2298, 256, %s9, [#allocation3], 128, 128, 8
    $region41: #{tpu_custom_call.1} parent=1 // pred_fallthru
      _
    // Predicated region
    $region42: #{tpu_custom_call.1} parent=1 // pred_check
      _
    $region43: #{tpu_custom_call.1} parent=1 // pred_check_branch
      %2305 = sbr.rel (0) target = $region45
    $region44: #{tpu_custom_call.1} parent=1 // pred_region
      %2306 = dma.done [#allocation3], 256
    $region45: #{tpu_custom_call.1} parent=1 // pred_fallthru
      _
    %2307 = vsyncpa [#allocation3], 1

</llo_original>
